<compile_context>
chip_gen: v7x
topology: tpu7x:2x2x1
jax: 0.10.0
libtpu: 0.0.40
codegen_flags: <defaults>
</compile_context>

<pallas_src>
import functools

import jax
import jax.numpy as jnp
from jax.experimental import pallas as pl
from jax.experimental.pallas import tpu as pltpu


# ---------------------------------------------------------------------------
# Fused kernel: one batch element per grid step.
# ---------------------------------------------------------------------------
def _fused_attention_kernel(x_ref, wqkv_ref, wproj_ref, bproj_ref, o_ref, *,
                            num_heads, scale, matmul_dtype):
    x = x_ref[0]                            # (N, C)
    N, C = x.shape
    Dh = C // num_heads

    def mm(a, b):                           # MXU matmul, f32 accumulation
        return jnp.dot(a.astype(matmul_dtype), b.astype(matmul_dtype),
                       preferred_element_type=jnp.float32)

    # --- qkv projection (qkv_bias=False -> no bias add, no bias DMA) -------
    qkv = mm(x, wqkv_ref[...])              # (N, 3C), columns laid out [3, H, Dh]

    # --- per-head q/k/v as (H, N, Dh); fold the scale into q ----------------
    qh = jnp.stack(
        [qkv[:, h * Dh:(h + 1) * Dh] for h in range(num_heads)], axis=0) * scale
    kh = jnp.stack(
        [qkv[:, C + h * Dh:C + (h + 1) * Dh] for h in range(num_heads)], axis=0)
    vh = jnp.stack(
        [qkv[:, 2 * C + h * Dh:2 * C + (h + 1) * Dh] for h in range(num_heads)],
        axis=0)

    # --- batched attention over all heads in one shot ----------------------
    s = jnp.einsum("hqd,hkd->hqk",
                   qh.astype(matmul_dtype), kh.astype(matmul_dtype),
                   preferred_element_type=jnp.float32)       # (H, N, N)
    s = s - jnp.max(s, axis=-1, keepdims=True)
    p = jnp.exp(s)                                           # softmax kept in f32
    p = p * pl.reciprocal(jnp.sum(p, axis=-1, keepdims=True), approx=True)
    oh = jnp.einsum("hqk,hkd->hqd",
                    p.astype(matmul_dtype), vh.astype(matmul_dtype),
                    preferred_element_type=jnp.float32)      # (H, N, Dh)

    # --- re-pack heads lane-dense: (N, C) so the store is full-width --------
    o = jnp.concatenate([oh[h] for h in range(num_heads)], axis=-1)  # (N, C)

    # --- output projection (attn_drop / proj_drop are p=0.0 -> identity) ----
    o_ref[0] = mm(o, wproj_ref[...]) + bproj_ref[...]


# ---------------------------------------------------------------------------
# Forward pass wrapper (matches PyTorch Attention.forward, qkv_bias=False)
# ---------------------------------------------------------------------------
def attention_forward(x, params, num_heads, matmul_dtype=jnp.float32):
    B, N, C = x.shape
    Dh = C // num_heads
    scale = Dh ** (-0.5)                    # qk_scale=None -> head_dim ** -0.5

    kernel = functools.partial(
        _fused_attention_kernel,
        num_heads=num_heads, scale=scale, matmul_dtype=matmul_dtype)

    # NOTE: for production-size ViT shapes (N~197+, C~768+), add a query-block
    # grid axis and tile the two projections with an accumulator scratch to
    # bound VMEM (especially on v7x's 64 MiB).  Not needed at these sizes.
    return pl.pallas_call(
        kernel,
        out_shape=jax.ShapeDtypeStruct((B, N, C), jnp.float32),
        grid=(B,),
        in_specs=[
            pl.BlockSpec((1, N, C), lambda b: (b, 0, 0)),    # x: one batch / step
            pl.BlockSpec((C, 3 * C), lambda b: (0, 0)),      # w_qkv (VMEM resident)
            pl.BlockSpec((C, C), lambda b: (0, 0)),          # w_proj (VMEM resident)
            pl.BlockSpec((1, C), lambda b: (0, 0)),          # b_proj
        ],
        out_specs=pl.BlockSpec((1, N, C), lambda b: (b, 0, 0)),
        compiler_params=pltpu.CompilerParams(
            dimension_semantics=("parallel",),               # megacore over batch
        ),
    )(x, params["w_qkv"], params["w_proj"], params["b_proj"].reshape(1, C))


# ---------------------------------------------------------------------------
# Plain-JAX reference (same math) for the correctness check
# ---------------------------------------------------------------------------
def reference_forward(x, params, num_heads):
    B, N, C = x.shape
    Dh = C // num_heads
    scale = Dh ** (-0.5)
    qkv = x.reshape(B * N, C) @ params["w_qkv"]              # qkv_bias=False
    qkv = qkv.reshape(B, N, 3, num_heads, Dh).transpose(2, 0, 3, 1, 4)
    q, k, v = qkv[0], qkv[1], qkv[2]
    attn = jnp.einsum("bhqd,bhkd->bhqk", q, k) * scale
    attn = jax.nn.softmax(attn, axis=-1)
    o = jnp.einsum("bhqk,bhkd->bhqd", attn, v)
    o = o.transpose(0, 2, 1, 3).reshape(B * N, C)
    out = o @ params["w_proj"] + params["b_proj"]
    return out.reshape(B, N, C)


if __name__ == "__main__":
    key = jax.random.PRNGKey(0)
    B, N, C, H = 2, 16, 64, 8      # dim=64, num_heads=8 -> head_dim=8

    k1, k2, k3, k4 = jax.random.split(key, 4)
    x = jax.random.normal(k1, (B, N, C), dtype=jnp.float32)

    # Weights stored (in, out) so y = x @ W + b (transposed vs. nn.Linear).
    params = {
        "w_qkv": jax.random.normal(k2, (C, 3 * C), dtype=jnp.float32) * 0.05,
        "w_proj": jax.random.normal(k3, (C, C), dtype=jnp.float32) * 0.05,
        "b_proj": jax.random.normal(k4, (C,), dtype=jnp.float32) * 0.01,
    }

    out = attention_forward(x, params, H)            # f32 MXU path (default)
    jax.block_until_ready(out)

    ref = reference_forward(x, params, H)
    assert out.shape == (B, N, C)
    # Tolerance covers the approximate (EUP) reciprocal used in the softmax.
    assert jnp.allclose(out, ref, atol=5e-3, rtol=5e-3), "mismatch vs reference"

    print("KERNEL_OK")
</pallas_src>

<mosaic_0001>
module attributes {stable_mosaic.version = 11 : i64} {
  func.func @_fused_attention_kernel(%arg0: i32, %arg1: memref<1x16x64xf32, #tpu.memory_space<vmem>>, %arg2: memref<64x192xf32, #tpu.memory_space<vmem>>, %arg3: memref<64x64xf32, #tpu.memory_space<vmem>>, %arg4: memref<1x64xf32, #tpu.memory_space<vmem>>, %arg5: memref<1x16x64xf32, #tpu.memory_space<vmem>>) attributes {dimension_semantics = [#tpu.dimension_semantics<parallel>], iteration_bounds = array<i64: 2>, scalar_prefetch = 0 : i64, scratch_operands = 0 : i64, tpu.core_type = #tpu.core_type<tc>, window_params = [{transform_indices = @transform_0, window_bounds = array<i64: 1, 16, 64>}, {pipeline_mode = #tpu.pipeline_mode<synchronous>, transform_indices = @transform_1, window_bounds = array<i64: 64, 192>}, {pipeline_mode = #tpu.pipeline_mode<synchronous>, transform_indices = @transform_2, window_bounds = array<i64: 64, 64>}, {pipeline_mode = #tpu.pipeline_mode<synchronous>, transform_indices = @transform_3, window_bounds = array<i64: 1, 64>}, {transform_indices = @transform_4, window_bounds = array<i64: 1, 16, 64>}]} {
    %c0 = arith.constant 0 : index
    %c0_0 = arith.constant 0 : index
    %c0_1 = arith.constant 0 : index
    %0 = vector.load %arg1[%c0, %c0_0, %c0_1] : memref<1x16x64xf32, #tpu.memory_space<vmem>>, vector<1x16x64xf32>
    %1 = vector.shape_cast %0 : vector<1x16x64xf32> to vector<16x64xf32>
    %c0_2 = arith.constant 0 : index
    %c0_3 = arith.constant 0 : index
    %2 = vector.load %arg2[%c0_2, %c0_3] : memref<64x192xf32, #tpu.memory_space<vmem>>, vector<64x192xf32>
    %cst = arith.constant dense<0.000000e+00> : vector<16x192xf32>
    %3 = tpu.matmul %1, %2, %cst {dimension_numbers = #tpu.dot_dimension_numbers<[1], [0], [0], [1], [0, 0, 1, 1], [], []>} : vector<16x64xf32>, vector<64x192xf32>, vector<16x192xf32> -> vector<16x192xf32>
    %4 = vector.extract_strided_slice %3 {offsets = [0, 0], sizes = [16, 8], strides = [1, 1]} : vector<16x192xf32> to vector<16x8xf32>
    %5 = vector.extract_strided_slice %3 {offsets = [0, 8], sizes = [16, 8], strides = [1, 1]} : vector<16x192xf32> to vector<16x8xf32>
    %6 = vector.extract_strided_slice %3 {offsets = [0, 16], sizes = [16, 8], strides = [1, 1]} : vector<16x192xf32> to vector<16x8xf32>
    %7 = vector.extract_strided_slice %3 {offsets = [0, 24], sizes = [16, 8], strides = [1, 1]} : vector<16x192xf32> to vector<16x8xf32>
    %8 = vector.extract_strided_slice %3 {offsets = [0, 32], sizes = [16, 8], strides = [1, 1]} : vector<16x192xf32> to vector<16x8xf32>
    %9 = vector.extract_strided_slice %3 {offsets = [0, 40], sizes = [16, 8], strides = [1, 1]} : vector<16x192xf32> to vector<16x8xf32>
    %10 = vector.extract_strided_slice %3 {offsets = [0, 48], sizes = [16, 8], strides = [1, 1]} : vector<16x192xf32> to vector<16x8xf32>
    %11 = vector.extract_strided_slice %3 {offsets = [0, 56], sizes = [16, 8], strides = [1, 1]} : vector<16x192xf32> to vector<16x8xf32>
    %12 = vector.shape_cast %4 : vector<16x8xf32> to vector<1x16x8xf32>
    %13 = vector.shape_cast %5 : vector<16x8xf32> to vector<1x16x8xf32>
    %14 = vector.shape_cast %6 : vector<16x8xf32> to vector<1x16x8xf32>
    %15 = vector.shape_cast %7 : vector<16x8xf32> to vector<1x16x8xf32>
    %16 = vector.shape_cast %8 : vector<16x8xf32> to vector<1x16x8xf32>
    %17 = vector.shape_cast %9 : vector<16x8xf32> to vector<1x16x8xf32>
    %18 = vector.shape_cast %10 : vector<16x8xf32> to vector<1x16x8xf32>
    %19 = vector.shape_cast %11 : vector<16x8xf32> to vector<1x16x8xf32>
    %20 = tpu.concatenate %12, %13, %14, %15, %16, %17, %18, %19 in 0 : vector<1x16x8xf32>, vector<1x16x8xf32>, vector<1x16x8xf32>, vector<1x16x8xf32>, vector<1x16x8xf32>, vector<1x16x8xf32>, vector<1x16x8xf32>, vector<1x16x8xf32> -> vector<8x16x8xf32>
    %cst_4 = arith.constant 0.353553385 : f32
    %21 = vector.broadcast %cst_4 : f32 to vector<8x16x8xf32>
    %22 = arith.mulf %20, %21 : vector<8x16x8xf32>
    %23 = vector.extract_strided_slice %3 {offsets = [0, 64], sizes = [16, 8], strides = [1, 1]} : vector<16x192xf32> to vector<16x8xf32>
    %24 = vector.extract_strided_slice %3 {offsets = [0, 72], sizes = [16, 8], strides = [1, 1]} : vector<16x192xf32> to vector<16x8xf32>
    %25 = vector.extract_strided_slice %3 {offsets = [0, 80], sizes = [16, 8], strides = [1, 1]} : vector<16x192xf32> to vector<16x8xf32>
    %26 = vector.extract_strided_slice %3 {offsets = [0, 88], sizes = [16, 8], strides = [1, 1]} : vector<16x192xf32> to vector<16x8xf32>
    %27 = vector.extract_strided_slice %3 {offsets = [0, 96], sizes = [16, 8], strides = [1, 1]} : vector<16x192xf32> to vector<16x8xf32>
    %28 = vector.extract_strided_slice %3 {offsets = [0, 104], sizes = [16, 8], strides = [1, 1]} : vector<16x192xf32> to vector<16x8xf32>
    %29 = vector.extract_strided_slice %3 {offsets = [0, 112], sizes = [16, 8], strides = [1, 1]} : vector<16x192xf32> to vector<16x8xf32>
    %30 = vector.extract_strided_slice %3 {offsets = [0, 120], sizes = [16, 8], strides = [1, 1]} : vector<16x192xf32> to vector<16x8xf32>
    %31 = vector.shape_cast %23 : vector<16x8xf32> to vector<1x16x8xf32>
    %32 = vector.shape_cast %24 : vector<16x8xf32> to vector<1x16x8xf32>
    %33 = vector.shape_cast %25 : vector<16x8xf32> to vector<1x16x8xf32>
    %34 = vector.shape_cast %26 : vector<16x8xf32> to vector<1x16x8xf32>
    %35 = vector.shape_cast %27 : vector<16x8xf32> to vector<1x16x8xf32>
    %36 = vector.shape_cast %28 : vector<16x8xf32> to vector<1x16x8xf32>
    %37 = vector.shape_cast %29 : vector<16x8xf32> to vector<1x16x8xf32>
    %38 = vector.shape_cast %30 : vector<16x8xf32> to vector<1x16x8xf32>
    %39 = tpu.concatenate %31, %32, %33, %34, %35, %36, %37, %38 in 0 : vector<1x16x8xf32>, vector<1x16x8xf32>, vector<1x16x8xf32>, vector<1x16x8xf32>, vector<1x16x8xf32>, vector<1x16x8xf32>, vector<1x16x8xf32>, vector<1x16x8xf32> -> vector<8x16x8xf32>
    %40 = vector.extract_strided_slice %3 {offsets = [0, 128], sizes = [16, 8], strides = [1, 1]} : vector<16x192xf32> to vector<16x8xf32>
    %41 = vector.extract_strided_slice %3 {offsets = [0, 136], sizes = [16, 8], strides = [1, 1]} : vector<16x192xf32> to vector<16x8xf32>
    %42 = vector.extract_strided_slice %3 {offsets = [0, 144], sizes = [16, 8], strides = [1, 1]} : vector<16x192xf32> to vector<16x8xf32>
    %43 = vector.extract_strided_slice %3 {offsets = [0, 152], sizes = [16, 8], strides = [1, 1]} : vector<16x192xf32> to vector<16x8xf32>
    %44 = vector.extract_strided_slice %3 {offsets = [0, 160], sizes = [16, 8], strides = [1, 1]} : vector<16x192xf32> to vector<16x8xf32>
    %45 = vector.extract_strided_slice %3 {offsets = [0, 168], sizes = [16, 8], strides = [1, 1]} : vector<16x192xf32> to vector<16x8xf32>
    %46 = vector.extract_strided_slice %3 {offsets = [0, 176], sizes = [16, 8], strides = [1, 1]} : vector<16x192xf32> to vector<16x8xf32>
    %47 = vector.extract_strided_slice %3 {offsets = [0, 184], sizes = [16, 8], strides = [1, 1]} : vector<16x192xf32> to vector<16x8xf32>
    %48 = vector.shape_cast %40 : vector<16x8xf32> to vector<1x16x8xf32>
    %49 = vector.shape_cast %41 : vector<16x8xf32> to vector<1x16x8xf32>
    %50 = vector.shape_cast %42 : vector<16x8xf32> to vector<1x16x8xf32>
    %51 = vector.shape_cast %43 : vector<16x8xf32> to vector<1x16x8xf32>
    %52 = vector.shape_cast %44 : vector<16x8xf32> to vector<1x16x8xf32>
    %53 = vector.shape_cast %45 : vector<16x8xf32> to vector<1x16x8xf32>
    %54 = vector.shape_cast %46 : vector<16x8xf32> to vector<1x16x8xf32>
    %55 = vector.shape_cast %47 : vector<16x8xf32> to vector<1x16x8xf32>
    %56 = tpu.concatenate %48, %49, %50, %51, %52, %53, %54, %55 in 0 : vector<1x16x8xf32>, vector<1x16x8xf32>, vector<1x16x8xf32>, vector<1x16x8xf32>, vector<1x16x8xf32>, vector<1x16x8xf32>, vector<1x16x8xf32>, vector<1x16x8xf32> -> vector<8x16x8xf32>
    "tpu.trace_start"() <{level = 10 : i32, message = "hqd,hkd->hqk"}> : () -> ()
    %cst_5 = arith.constant dense<0.000000e+00> : vector<8x16x16xf32>
    %57 = tpu.matmul %22, %39, %cst_5 {dimension_numbers = #tpu.dot_dimension_numbers<[2], [2], [1], [1], [0, 0, 0, 1, 1, 1], [0], [0]>} : vector<8x16x8xf32>, vector<8x16x8xf32>, vector<8x16x16xf32> -> vector<8x16x16xf32>
    "tpu.trace_stop"() : () -> ()
    %cst_6 = arith.constant dense<0xFF800000> : vector<8x16xf32>
    %58 = vector.multi_reduction <maximumf>, %57, %cst_6 [2] : vector<8x16x16xf32> to vector<8x16xf32>
    %59 = vector.shape_cast %58 : vector<8x16xf32> to vector<8x16x1xf32>
    %60 = vector.broadcast %59 : vector<8x16x1xf32> to vector<8x16x16xf32>
    %61 = arith.subf %57, %60 : vector<8x16x16xf32>
    %62 = math.exp %61 : vector<8x16x16xf32>
    %cst_7 = arith.constant dense<0.000000e+00> : vector<8x16xf32>
    %63 = vector.multi_reduction <add>, %62, %cst_7 [2] : vector<8x16x16xf32> to vector<8x16xf32>
    %64 = vector.shape_cast %63 : vector<8x16xf32> to vector<8x16x1xf32>
    %65 = tpu.reciprocal %64 {approx = true} : vector<8x16x1xf32> -> vector<8x16x1xf32>
    %66 = vector.broadcast %65 : vector<8x16x1xf32> to vector<8x16x16xf32>
    %67 = arith.mulf %62, %66 : vector<8x16x16xf32>
    "tpu.trace_start"() <{level = 10 : i32, message = "hqk,hkd->hqd"}> : () -> ()
    %cst_8 = arith.constant dense<0.000000e+00> : vector<8x16x8xf32>
    %68 = tpu.matmul %67, %56, %cst_8 {dimension_numbers = #tpu.dot_dimension_numbers<[2], [1], [1], [2], [0, 0, 0, 1, 1, 2], [0], [0]>} : vector<8x16x16xf32>, vector<8x16x8xf32>, vector<8x16x8xf32> -> vector<8x16x8xf32>
    "tpu.trace_stop"() : () -> ()
    %69 = vector.extract_strided_slice %68 {offsets = [0, 0, 0], sizes = [1, 16, 8], strides = [1, 1, 1]} : vector<8x16x8xf32> to vector<1x16x8xf32>
    %70 = vector.shape_cast %69 : vector<1x16x8xf32> to vector<16x8xf32>
    %71 = vector.extract_strided_slice %68 {offsets = [1, 0, 0], sizes = [1, 16, 8], strides = [1, 1, 1]} : vector<8x16x8xf32> to vector<1x16x8xf32>
    %72 = vector.shape_cast %71 : vector<1x16x8xf32> to vector<16x8xf32>
    %73 = vector.extract_strided_slice %68 {offsets = [2, 0, 0], sizes = [1, 16, 8], strides = [1, 1, 1]} : vector<8x16x8xf32> to vector<1x16x8xf32>
    %74 = vector.shape_cast %73 : vector<1x16x8xf32> to vector<16x8xf32>
    %75 = vector.extract_strided_slice %68 {offsets = [3, 0, 0], sizes = [1, 16, 8], strides = [1, 1, 1]} : vector<8x16x8xf32> to vector<1x16x8xf32>
    %76 = vector.shape_cast %75 : vector<1x16x8xf32> to vector<16x8xf32>
    %77 = vector.extract_strided_slice %68 {offsets = [4, 0, 0], sizes = [1, 16, 8], strides = [1, 1, 1]} : vector<8x16x8xf32> to vector<1x16x8xf32>
    %78 = vector.shape_cast %77 : vector<1x16x8xf32> to vector<16x8xf32>
    %79 = vector.extract_strided_slice %68 {offsets = [5, 0, 0], sizes = [1, 16, 8], strides = [1, 1, 1]} : vector<8x16x8xf32> to vector<1x16x8xf32>
    %80 = vector.shape_cast %79 : vector<1x16x8xf32> to vector<16x8xf32>
    %81 = vector.extract_strided_slice %68 {offsets = [6, 0, 0], sizes = [1, 16, 8], strides = [1, 1, 1]} : vector<8x16x8xf32> to vector<1x16x8xf32>
    %82 = vector.shape_cast %81 : vector<1x16x8xf32> to vector<16x8xf32>
    %83 = vector.extract_strided_slice %68 {offsets = [7, 0, 0], sizes = [1, 16, 8], strides = [1, 1, 1]} : vector<8x16x8xf32> to vector<1x16x8xf32>
    %84 = vector.shape_cast %83 : vector<1x16x8xf32> to vector<16x8xf32>
    %85 = tpu.concatenate %70, %72, %74, %76, %78, %80, %82, %84 in 1 : vector<16x8xf32>, vector<16x8xf32>, vector<16x8xf32>, vector<16x8xf32>, vector<16x8xf32>, vector<16x8xf32>, vector<16x8xf32>, vector<16x8xf32> -> vector<16x64xf32>
    %c0_9 = arith.constant 0 : index
    %c0_10 = arith.constant 0 : index
    %86 = vector.load %arg3[%c0_9, %c0_10] : memref<64x64xf32, #tpu.memory_space<vmem>>, vector<64x64xf32>
    %cst_11 = arith.constant dense<0.000000e+00> : vector<16x64xf32>
    %87 = tpu.matmul %85, %86, %cst_11 {dimension_numbers = #tpu.dot_dimension_numbers<[1], [0], [0], [1], [0, 0, 1, 1], [], []>} : vector<16x64xf32>, vector<64x64xf32>, vector<16x64xf32> -> vector<16x64xf32>
    %c0_12 = arith.constant 0 : index
    %c0_13 = arith.constant 0 : index
    %88 = vector.load %arg4[%c0_12, %c0_13] : memref<1x64xf32, #tpu.memory_space<vmem>>, vector<1x64xf32>
    %89 = vector.broadcast %88 : vector<1x64xf32> to vector<16x64xf32>
    %90 = arith.addf %87, %89 : vector<16x64xf32>
    %c0_14 = arith.constant 0 : index
    %c0_15 = arith.constant 0 : index
    %c0_16 = arith.constant 0 : index
    %91 = vector.load %arg5[%c0_14, %c0_15, %c0_16] : memref<1x16x64xf32, #tpu.memory_space<vmem>>, vector<1x16x64xf32>
    %92 = vector.shape_cast %91 : vector<1x16x64xf32> to vector<16x64xf32>
    %93 = vector.shape_cast %90 : vector<16x64xf32> to vector<1x16x64xf32>
    tpu.vector_store %arg5[%c0_14, %c0_15, %c0_16], %93 {strides = array<i32>} : memref<1x16x64xf32, #tpu.memory_space<vmem>>, vector<1x16x64xf32>,
    return
  }
  func.func @transform_0(%arg0: i32) -> (i32, i32, i32) {
    %c0_i32 = arith.constant 0 : i32
    %c0_i32_0 = arith.constant 0 : i32
    %c0_i32_1 = arith.constant 0 : i32
    return %arg0, %c0_i32, %c0_i32_0 : i32, i32, i32
  }
  func.func @transform_1(%arg0: i32) -> (i32, i32) {
    %c0_i32 = arith.constant 0 : i32
    %c0_i32_0 = arith.constant 0 : i32
    %c0_i32_1 = arith.constant 0 : i32
    return %c0_i32, %c0_i32_0 : i32, i32
  }
  func.func @transform_2(%arg0: i32) -> (i32, i32) {
    %c0_i32 = arith.constant 0 : i32
    %c0_i32_0 = arith.constant 0 : i32
    %c0_i32_1 = arith.constant 0 : i32
    return %c0_i32, %c0_i32_0 : i32, i32
  }
  func.func @transform_3(%arg0: i32) -> (i32, i32) {
    %c0_i32 = arith.constant 0 : i32
    %c0_i32_0 = arith.constant 0 : i32
    %c0_i32_1 = arith.constant 0 : i32
    return %c0_i32, %c0_i32_0 : i32, i32
  }
  func.func @transform_4(%arg0: i32) -> (i32, i32, i32) {
    %c0_i32 = arith.constant 0 : i32
    %c0_i32_0 = arith.constant 0 : i32
    %c0_i32_1 = arith.constant 0 : i32
    return %arg0, %c0_i32, %c0_i32_0 : i32, i32, i32
  }
}

</mosaic_0001>

<llo_original>
// kernel: tpu_custom_call.1
$region0: #{tpu_custom_call.1}
  #allocation0 [shape = 'u32[]', space=smem, size = 0x4, offset = 0x4, fixed_abs, tag = 'smem constant byte address 0x4 - core index']
  #allocation1 [shape = 'u32[144,128]{1,0:T(1,128)}', space=vmem, size = 0x12000, scoped, tag = 'internal scratch']
  %s0 = inlined_call_operand.hbm [shape: f32[2,16,64], index: 0, kind: input, shape index: {}]
  %s1 = inlined_call_operand.hbm [shape: f32[64,192], index: 1, kind: input, shape index: {}]
  %s2 = inlined_call_operand.hbm [shape: f32[64,64], index: 2, kind: input, shape index: {}]
  %s3 = inlined_call_operand.vmem [shape: f32[1,64], index: 3, kind: input, shape index: {}]
  %s4 = inlined_call_operand.hbm [shape: f32[2,16,64], index: 4, kind: output, shape index: {}]
  %s5 = sld [smem:[#allocation0]]
  $region61: #{tpu_custom_call.1} parent=0
    _
  %s7 = ssub.s32 1, %s5
  %s8 = scalar_select 0, %s7, %s5
  $region1: #{tpu_custom_call.1} parent=0
    #allocation2 [shape = 'u8[16384]{0}', space=vmem, size = 0x4000, scoped, tag = 'input window, operand 0']
    #allocation3 [shape = 's32[2]{0}', space=sflag, size = 0x8, scoped, tag = 'scoped memory for tpu_custom_call.1']
    #allocation4 [shape = 's32[2]{0}', space=sflag, size = 0x8, scoped, tag = 'scoped memory for tpu_custom_call.1']
    #allocation5 [shape = 'u8[65536]{0}', space=vmem, size = 0x10000, scoped, tag = 'input window, operand 1, single buffered']
    #allocation6 [shape = 's32[1]{0}', space=sflag, size = 0x4, scoped, tag = 'scoped memory for tpu_custom_call.1']
    #allocation7 [shape = 'u8[32768]{0}', space=vmem, size = 0x8000, scoped, tag = 'input window, operand 2, single buffered']
    #allocation8 [shape = 'u8[16384]{0}', space=vmem, size = 0x4000, scoped, tag = 'output window, operand 0']
    %9 = vsyncpa [#allocation3], 0
    %s10 = scalar_lea.sflag [#allocation3], 1
    %11 = vsyncpa %s10, 0
    %12 = vsyncpa [#allocation6], 0
    %13 = vsyncpa [#allocation4], 0
    %s14 = scalar_lea.sflag [#allocation4], 1
    %15 = vsyncpa %s14, 0
    loop: start=0, step=1, limit=4
    $region2: #{tpu_custom_call.1} parent=1 // loop_pre_header
      _
    $region3: #{tpu_custom_call.1} parent=1 // loop_header
      %s17 = sphi 0, %s21
      %p18 = scmp.ge.s32.totalorder %s17, 4
      %s27 = sphi 0, %s29
      %s30 = sphi 0, %s27
      %s31 = sphi 0, %s30
      %s47 = sphi 0, %s31
      %s51 = sphi 0, %s51
      %s53 = sphi 0, %s51
      %s54 = sphi 0, %s53
      %s68 = sphi 0, %s54
      %s72 = sphi 0, %s72
      %s74 = sphi 0, %s72
      %s75 = sphi 0, %s74
      %s89 = sphi 0, %s75
      %s93 = sphi 0, %s93
      %s95 = sphi 0, %s93
      %s96 = sphi 0, %s95
      %s110 = sphi 0, %s96
      %s116 = sphi 0, %s118
      %s119 = sphi 0, %s116
      %s120 = sphi 0, %s119
      %s136 = sphi 0, %s120
    $region4: #{tpu_custom_call.1} parent=1 // loop_header_branch
      %20 = sbr.rel (%p18) target = $region8
    $region5: #{tpu_custom_call.1} parent=1 // loop_body
      %s22 = ssub.s32 %s17, 1
      %s23 = ssub.s32 %s17, 2
      %s24 = sadd.s32 %s17, 1
      %s25 = ssub.s32 %s17, %s24
      %p26 = scmp.eq.s32.totalorder %s25, 0
      %s28 = sadd.s32 %s27, 1
      %s29 = scalar_select %p26, %s27, %s28
      %p32 = pneg %p26
      %p33 = scmp.eq.s32.totalorder %s17, 1
      %p34 = por %p32, %p33
      %p35 = scmp.ne.s32.totalorder %s27, %s30
      %p36 = scmp.eq.s32.totalorder %s17, 0
      %p37 = por %p35, %p36
      %p38 = scmp.ne.s32.totalorder %s27, %s30
      %p39 = scmp.eq.s32.totalorder %s22, 1
      %p40 = por %p38, %p39
      %p41 = scmp.ne.s32.totalorder %s30, %s31
      %p42 = scmp.eq.s32.totalorder %s22, 0
      %p43 = por %p41, %p42
      %p44 = scmp.ne.s32.totalorder %s30, %s31
      %p45 = scmp.eq.s32.totalorder %s23, 1
      %p46 = por %p44, %p45
      %p48 = scmp.ne.s32.totalorder %s31, %s47
      %p49 = scmp.eq.s32.totalorder %s23, 0
      %p50 = por %p48, %p49
      %s52 = sadd.s32 %s51, 1
      %p55 = scmp.eq.s32.totalorder %s17, 1
      %p56 = scmp.ne.s32.totalorder %s51, %s53
      %p57 = scmp.eq.s32.totalorder %s17, 0
      %p58 = por %p56, %p57
      %p59 = scmp.ne.s32.totalorder %s51, %s53
      %p60 = scmp.eq.s32.totalorder %s22, 1
      %p61 = por %p59, %p60
      %p62 = scmp.ne.s32.totalorder %s53, %s54
      %p63 = scmp.eq.s32.totalorder %s22, 0
      %p64 = por %p62, %p63
      %p65 = scmp.ne.s32.totalorder %s53, %s54
      %p66 = scmp.eq.s32.totalorder %s23, 1
      %p67 = por %p65, %p66
      %p69 = scmp.ne.s32.totalorder %s54, %s68
      %p70 = scmp.eq.s32.totalorder %s23, 0
      %p71 = por %p69, %p70
      %s73 = sadd.s32 %s72, 1
      %p76 = scmp.eq.s32.totalorder %s17, 1
      %p77 = scmp.ne.s32.totalorder %s72, %s74
      %p78 = scmp.eq.s32.totalorder %s17, 0
      %p79 = por %p77, %p78
      %p80 = scmp.ne.s32.totalorder %s72, %s74
      %p81 = scmp.eq.s32.totalorder %s22, 1
      %p82 = por %p80, %p81
      %p83 = scmp.ne.s32.totalorder %s74, %s75
      %p84 = scmp.eq.s32.totalorder %s22, 0
      %p85 = por %p83, %p84
      %p86 = scmp.ne.s32.totalorder %s74, %s75
      %p87 = scmp.eq.s32.totalorder %s23, 1
      %p88 = por %p86, %p87
      %p90 = scmp.ne.s32.totalorder %s75, %s89
      %p91 = scmp.eq.s32.totalorder %s23, 0
      %p92 = por %p90, %p91
      %s94 = sadd.s32 %s93, 1
      %p97 = scmp.eq.s32.totalorder %s17, 1
      %p98 = scmp.ne.s32.totalorder %s93, %s95
      %p99 = scmp.eq.s32.totalorder %s17, 0
      %p100 = por %p98, %p99
      %p101 = scmp.ne.s32.totalorder %s93, %s95
      %p102 = scmp.eq.s32.totalorder %s22, 1
      %p103 = por %p101, %p102
      %p104 = scmp.ne.s32.totalorder %s95, %s96
      %p105 = scmp.eq.s32.totalorder %s22, 0
      %p106 = por %p104, %p105
      %p107 = scmp.ne.s32.totalorder %s95, %s96
      %p108 = scmp.eq.s32.totalorder %s23, 1
      %p109 = por %p107, %p108
      %p111 = scmp.ne.s32.totalorder %s96, %s110
      %p112 = scmp.eq.s32.totalorder %s23, 0
      %p113 = por %p111, %p112
      %s114 = ssub.s32 %s17, %s24
      %p115 = scmp.eq.s32.totalorder %s114, 0
      %s117 = sadd.s32 %s116, 1
      %s118 = scalar_select %p115, %s116, %s117
      %p121 = pneg %p115
      %p122 = scmp.eq.s32.totalorder %s17, 1
      %p123 = por %p121, %p122
      %p124 = scmp.ne.s32.totalorder %s116, %s119
      %p125 = scmp.eq.s32.totalorder %s17, 0
      %p126 = por %p124, %p125
      %p127 = scmp.ne.s32.totalorder %s116, %s119
      %p128 = scmp.eq.s32.totalorder %s22, 1
      %p129 = por %p127, %p128
      %p130 = scmp.ne.s32.totalorder %s119, %s120
      %p131 = scmp.eq.s32.totalorder %s22, 0
      %p132 = por %p130, %p131
      %p133 = scmp.ne.s32.totalorder %s119, %s120
      %p134 = scmp.eq.s32.totalorder %s23, 1
      %p135 = por %p133, %p134
      %p137 = scmp.ne.s32.totalorder %s120, %s136
      %p138 = scmp.eq.s32.totalorder %s23, 0
      %p139 = por %p137, %p138
      %p140 = scmp.le.s32.totalorder 1, %s17
      %p141 = scmp.lt.s32.totalorder %s17, 3
      %p142 = pnand %p140, %p141
      %p143 = pneg %p142
      // Predicated region
      $region9: #{tpu_custom_call.1} parent=5 // pred_check
        _
      $region10: #{tpu_custom_call.1} parent=5 // pred_check_branch
        %145 = sbr.rel (%p142) target = $region12
      $region11: #{tpu_custom_call.1} parent=5 // pred_region
        %s146 = ssub.s32 %s17, 1
        // Predicated region
        $region13: #{tpu_custom_call.1} parent=11 // pred_check
          %p147 = pneg %p64
        $region14: #{tpu_custom_call.1} parent=11 // pred_check_branch
          %149 = sbr.rel (%p147) target = $region16
        $region15: #{tpu_custom_call.1} parent=11 // pred_region
          %s151 = ssub.s32 2048, 2048
          %152 = vsyncadd [#allocation6], %s151
          %s153 = sshll.u32 [#allocation5], 4
          %s154 = int_to_ptr.vmem [resolvable:$true] %s153
          %159 = dma.hbm_to_vmem [thread:$0]  %s1, 2048, %s154, [#allocation6], 256, 256, 16
        $region16: #{tpu_custom_call.1} parent=11 // pred_fallthru
          _
        // Predicated region
        $region17: #{tpu_custom_call.1} parent=11 // pred_check
          %p160 = pneg %p85
        $region18: #{tpu_custom_call.1} parent=11 // pred_check_branch
          %162 = sbr.rel (%p160) target = $region20
        $region19: #{tpu_custom_call.1} parent=11 // pred_region
          %s164 = ssub.s32 1024, 1024
          %165 = vsyncadd [#allocation6], %s164
          %s166 = sshll.u32 [#allocation7], 4
          %s167 = int_to_ptr.vmem [resolvable:$true] %s166
          %172 = dma.hbm_to_vmem [thread:$0]  %s2, 1024, %s167, [#allocation6], 128, 128, 8
        $region20: #{tpu_custom_call.1} parent=11 // pred_fallthru
          _
        // Predicated region
        $region21: #{tpu_custom_call.1} parent=11 // pred_check
          %p173 = pneg %p106
        $region22: #{tpu_custom_call.1} parent=11 // pred_check_branch
          %175 = sbr.rel (%p173) target = $region24
        $region23: #{tpu_custom_call.1} parent=11 // pred_region
          _
        $region24: #{tpu_custom_call.1} parent=11 // pred_fallthru
          _
      $region12: #{tpu_custom_call.1} parent=5 // pred_fallthru
        _
      %p176 = scmp.lt.s32.totalorder %s17, 2
      // Predicated region
      $region25: #{tpu_custom_call.1} parent=5 // pred_check
        %p177 = pneg %p176
      $region26: #{tpu_custom_call.1} parent=5 // pred_check_branch
        %179 = sbr.rel (%p177) target = $region28
      $region27: #{tpu_custom_call.1} parent=5 // pred_region
        // Predicated region
        $region29: #{tpu_custom_call.1} parent=27 // pred_check
          %p180 = pneg %p37
        $region30: #{tpu_custom_call.1} parent=27 // pred_check_branch
          %182 = sbr.rel (%p180) target = $region32
        $region31: #{tpu_custom_call.1} parent=27 // pred_region
          %s183 = sand.u32 %s27, 1
          %s184 = scalar_lea.sflag [#allocation3], %s183
          %s185 = sand.u32 %s27, 1
          %s186 = smul.addr %s185, 16
          %s187 = scalar_lea.vmem [#allocation2], %s186
          %s189 = ssub.s32 256, 256
          %190 = vsyncadd %s184, %s189
          %s191 = smul.addr %s17, 2
          %s192 = smul.addr %s191, 128
          %s193 = scalar_lea.hbm %s0, %s192
          %s194 = sshll.u32 %s187, 4
          %s195 = int_to_ptr.vmem [resolvable:$true] %s194
          %200 = dma.hbm_to_vmem [thread:$0]  %s193, 256, %s195, %s184, 128, 128, 8
        $region32: #{tpu_custom_call.1} parent=27 // pred_fallthru
          _
      $region28: #{tpu_custom_call.1} parent=5 // pred_fallthru
        _
      %p201 = scmp.le.s32.totalorder 1, %s17
      %p202 = scmp.lt.s32.totalorder %s17, 3
      %p203 = pnand %p201, %p202
      %p204 = pneg %p203
      // Predicated region
      $region33: #{tpu_custom_call.1} parent=5 // pred_check
        _
      $region34: #{tpu_custom_call.1} parent=5 // pred_check_branch
        %206 = sbr.rel (%p203) target = $region36
      $region35: #{tpu_custom_call.1} parent=5 // pred_region
        %s207 = ssub.s32 %s17, 1
        %s208 = sand.u32 %s30, 1
        %s209 = scalar_lea.sflag [#allocation3], %s208
        %s210 = sand.u32 %s30, 1
        %s211 = smul.addr %s210, 16
        %s212 = scalar_lea.vmem [#allocation2], %s211
        // Predicated region
        $region37: #{tpu_custom_call.1} parent=35 // pred_check
          %p213 = pneg %p43
        $region38: #{tpu_custom_call.1} parent=35 // pred_check_branch
          %215 = sbr.rel (%p213) target = $region40
        $region39: #{tpu_custom_call.1} parent=35 // pred_region
          %216 = dma.done %s209, 256
        $region40: #{tpu_custom_call.1} parent=35 // pred_fallthru
          _
        // Predicated region
        $region41: #{tpu_custom_call.1} parent=35 // pred_check
          %p217 = pneg %p64
        $region42: #{tpu_custom_call.1} parent=35 // pred_check_branch
          %219 = sbr.rel (%p217) target = $region44
        $region43: #{tpu_custom_call.1} parent=35 // pred_region
          %220 = dma.done [#allocation6], 2048
        $region44: #{tpu_custom_call.1} parent=35 // pred_fallthru
          _
        // Predicated region
        $region45: #{tpu_custom_call.1} parent=35 // pred_check
          %p221 = pneg %p85
        $region46: #{tpu_custom_call.1} parent=35 // pred_check_branch
          %223 = sbr.rel (%p221) target = $region48
        $region47: #{tpu_custom_call.1} parent=35 // pred_region
          %224 = dma.done [#allocation6], 1024
        $region48: #{tpu_custom_call.1} parent=35 // pred_fallthru
          _
        %s225 = sand.u32 %s30, 1
        %s226 = scalar_lea.sflag [#allocation3], %s225
        %s227 = sand.u32 %s30, 1
        %s228 = smul.addr %s227, 16
        %s229 = scalar_lea.vmem [#allocation2], %s228
        %p230 = pneg %p43
        %p231 = pneg %p40
        %p232 = pneg %p64
        %p233 = pneg %p61
        %p234 = pneg %p85
        %p235 = pneg %p82
        %p236 = pneg %p106
        %p237 = pneg %p103
        %p238 = pneg %p132
        %p239 = pneg %p129
        %s240 = sand.u32 %s119, 1
        %s241 = scalar_lea.sflag [#allocation4], %s240
        %s242 = sand.u32 %s119, 1
        %s243 = smul.addr %s242, 16
        %s244 = scalar_lea.vmem [#allocation8], %s243
        %v245 = vld [vmem:[%s212] sm:$0xff]
        %v246 = vld [vmem:[%s212 + $0x8] sm:$0xff]
        %v247 = vld [vmem:[#allocation5] sm:$0xff]
        %v248 = vld [vmem:[#allocation5 + $0x8] sm:$0xff]
        %v249 = vld [vmem:[#allocation5 + $0x10] sm:$0xff]
        %v250 = vld [vmem:[#allocation5 + $0x18] sm:$0xff]
        %v251 = vld [vmem:[#allocation5 + $0x20] sm:$0xff]
        %v252 = vld [vmem:[#allocation5 + $0x28] sm:$0xff]
        %v253 = vld [vmem:[#allocation5 + $0x30] sm:$0xff]
        %v254 = vld [vmem:[#allocation5 + $0x38] sm:$0xff]
        %v255 = vld [vmem:[#allocation5 + $0x40] sm:$0xff]
        %v256 = vld [vmem:[#allocation5 + $0x48] sm:$0xff]
        %v257 = vld [vmem:[#allocation5 + $0x50] sm:$0xff]
        %v258 = vld [vmem:[#allocation5 + $0x58] sm:$0xff]
        %v259 = vld [vmem:[#allocation5 + $0x60] sm:$0xff]
        %v260 = vld [vmem:[#allocation5 + $0x68] sm:$0xff]
        %v261 = vld [vmem:[#allocation5 + $0x70] sm:$0xff]
        %v262 = vld [vmem:[#allocation5 + $0x78] sm:$0xff]
        %vm263 = vcmask 523264
        %v265 = vsel %vm263, %v245, 0
        %v268 = vsel %vm263, %v246, 0
        %270 = vmatprep.subr.mxu0 %v248
        %271 = vmatpush1.msra.mxu0 %v247
        %272 = vmatprep.subr.mxu0 %v250
        %273 = vmatpush1.msra.mxu0 %v249
        %274 = vmatprep.subr.mxu0 %v252
        %275 = vmatpush1.msra.mxu0 %v251
        %276 = vmatprep.subr.mxu0 %v254
        %277 = vmatpush1.msra.mxu0 %v253
        %278 = vmatprep.subr.mxu0 %v256
        %279 = vmatpush1.msra.mxu0 %v255
        %280 = vmatprep.subr.mxu0 %v258
        %281 = vmatpush1.msra.mxu0 %v257
        %282 = vmatprep.subr.mxu0 %v260
        %283 = vmatpush1.msra.mxu0 %v259
        %284 = vmatprep.subr.mxu0 %v262
        %285 = vmatpush1.msra.mxu0 %v261
        %286 = vmatprep.subr.mxu0 0.0
        %287 = vmatpush1.msra.mxu0 0.0
        %288 = vmatprep.subr.mxu0 0.0
        %289 = vmatpush1.msra.mxu0 0.0
        %290 = vmatprep.subr.mxu0 0.0
        %291 = vmatpush1.msra.mxu0 0.0
        %292 = vmatprep.subr.mxu0 0.0
        %293 = vmatpush1.msra.mxu0 0.0
        %294 = vmatprep.subr.mxu0 0.0
        %295 = vmatpush1.msra.mxu0 0.0
        %296 = vmatprep.subr.mxu0 0.0
        %297 = vmatpush1.msra.mxu0 0.0
        %298 = vmatprep.subr.mxu0 0.0
        %299 = vmatpush1.msra.mxu0 0.0
        %300 = vmatprep.subr.mxu0 0.0
        %301 = vmatpush1.msra.mxu0 0.0
        %302 = vmatprep.subr.mxu0 0.0
        %303 = vmatpush1.msra.mxu0 0.0
        %304 = vmatprep.subr.mxu0 0.0
        %305 = vmatpush1.msra.mxu0 0.0
        %306 = vmatprep.subr.mxu0 0.0
        %307 = vmatpush1.msra.mxu0 0.0
        %308 = vmatprep.subr.mxu0 0.0
        %309 = vmatpush1.msra.mxu0 0.0
        %310 = vmatprep.subr.mxu0 0.0
        %311 = vmatpush1.msra.mxu0 0.0
        %312 = vmatprep.subr.mxu0 0.0
        %313 = vmatpush1.msra.mxu0 0.0
        %314 = vmatprep.subr.mxu0 0.0
        %315 = vmatpush1.msra.mxu0 0.0
        %316 = vmatprep.subr.mxu0 0.0
        %317 = vmatpush1.msra.mxu0 0.0
        %318 = vmatprep.subr.mxu0 0.0
        %319 = vmatpush1.msra.mxu0 0.0
        %320 = vmatprep.subr.mxu0 0.0
        %321 = vmatpush1.msra.mxu0 0.0
        %322 = vmatprep.subr.mxu0 0.0
        %323 = vmatpush1.msra.mxu0 0.0
        %324 = vmatprep.subr.mxu0 0.0
        %325 = vmatpush1.msra.mxu0 0.0
        %326 = vmatprep.subr.mxu0 0.0
        %327 = vmatpush1.msra.mxu0 0.0
        %328 = vmatprep.subr.mxu0 0.0
        %329 = vmatpush1.msra.mxu0 0.0
        %330 = vmatprep.subr.mxu0 0.0
        %331 = vmatpush1.msra.mxu0 0.0
        %332 = vmatprep.subr.mxu0 0.0
        %333 = vmatpush1.msra.mxu0 0.0
        %334 = vmatprep.mubr.f32.mxu0 0.0
        %335 = vmatmul.mubr.f32.gmra.mrb[0].mxu0 %v265
        %v336 = vpop.f32.mrb[0].mxu0
        %v337 = vadd.f32 0.0, %v336
        %v338 = vpop.f32.mrb[0].mxu0
        %v339 = vadd.f32 0.0, %v338
        %340 = vmatprep.mubr.f32.mxu0 0.0
        %341 = vmatmul.mubr.f32.gmra.mrb[0].mxu0 %v268
        %v342 = vpop.f32.mrb[0].mxu0
        %v343 = vadd.f32 0.0, %v342
        %v344 = vpop.f32.mrb[0].mxu0
        %v345 = vadd.f32 0.0, %v344
        %346 = vdwg.mxu0
        %349 = vrot.lane.b32.xlu0 %v337, 120
        %v350 = vpop.permute.xlu0 %349
        %351 = vrot.lane.b32.xlu0 %v343, 120
        %v352 = vpop.permute.xlu0 %351
        %355 = vrot.lane.b32.xlu0 %v337, 112
        %v356 = vpop.permute.xlu0 %355
        %357 = vrot.lane.b32.xlu0 %v343, 112
        %v358 = vpop.permute.xlu0 %357
        %361 = vrot.lane.b32.xlu0 %v337, 104
        %v362 = vpop.permute.xlu0 %361
        %363 = vrot.lane.b32.xlu0 %v343, 104
        %v364 = vpop.permute.xlu0 %363
        %367 = vrot.lane.b32.xlu0 %v337, 96
        %v368 = vpop.permute.xlu0 %367
        %369 = vrot.lane.b32.xlu0 %v343, 96
        %v370 = vpop.permute.xlu0 %369
        %373 = vrot.lane.b32.xlu0 %v337, 88
        %v374 = vpop.permute.xlu0 %373
        %375 = vrot.lane.b32.xlu0 %v343, 88
        %v376 = vpop.permute.xlu0 %375
        %379 = vrot.lane.b32.xlu0 %v337, 80
        %v380 = vpop.permute.xlu0 %379
        %381 = vrot.lane.b32.xlu0 %v343, 80
        %v382 = vpop.permute.xlu0 %381
        %385 = vrot.lane.b32.xlu0 %v337, 72
        %v386 = vpop.permute.xlu0 %385
        %387 = vrot.lane.b32.xlu0 %v343, 72
        %v388 = vpop.permute.xlu0 %387
        %v391 = vmul.f32 %v337, 0.35355338
        %v392 = vmul.f32 %v343, 0.35355338
        %v393 = vmul.f32 %v350, 0.35355338
        %v394 = vmul.f32 %v352, 0.35355338
        %v395 = vmul.f32 %v356, 0.35355338
        %v396 = vmul.f32 %v358, 0.35355338
        %v397 = vmul.f32 %v362, 0.35355338
        %v398 = vmul.f32 %v364, 0.35355338
        %v399 = vmul.f32 %v368, 0.35355338
        %v400 = vmul.f32 %v370, 0.35355338
        %v401 = vmul.f32 %v374, 0.35355338
        %v402 = vmul.f32 %v376, 0.35355338
        %v403 = vmul.f32 %v380, 0.35355338
        %v404 = vmul.f32 %v382, 0.35355338
        %v405 = vmul.f32 %v386, 0.35355338
        %v406 = vmul.f32 %v388, 0.35355338
        %409 = vrot.lane.b32.xlu0 %v339, 120
        %v410 = vpop.permute.xlu0 %409
        %411 = vrot.lane.b32.xlu0 %v345, 120
        %v412 = vpop.permute.xlu0 %411
        %415 = vrot.lane.b32.xlu0 %v339, 112
        %v416 = vpop.permute.xlu0 %415
        %417 = vrot.lane.b32.xlu0 %v345, 112
        %v418 = vpop.permute.xlu0 %417
        %421 = vrot.lane.b32.xlu0 %v339, 104
        %v422 = vpop.permute.xlu0 %421
        %423 = vrot.lane.b32.xlu0 %v345, 104
        %v424 = vpop.permute.xlu0 %423
        %427 = vrot.lane.b32.xlu0 %v339, 96
        %v428 = vpop.permute.xlu0 %427
        %429 = vrot.lane.b32.xlu0 %v345, 96
        %v430 = vpop.permute.xlu0 %429
        %433 = vrot.lane.b32.xlu0 %v339, 88
        %v434 = vpop.permute.xlu0 %433
        %435 = vrot.lane.b32.xlu0 %v345, 88
        %v436 = vpop.permute.xlu0 %435
        %439 = vrot.lane.b32.xlu0 %v339, 80
        %v440 = vpop.permute.xlu0 %439
        %441 = vrot.lane.b32.xlu0 %v345, 80
        %v442 = vpop.permute.xlu0 %441
        %445 = vrot.lane.b32.xlu0 %v339, 72
        %v446 = vpop.permute.xlu0 %445
        %447 = vrot.lane.b32.xlu0 %v345, 72
        %v448 = vpop.permute.xlu0 %447
        %451 = vrot.lane.b32.xlu0 %v337, 64
        %v452 = vpop.permute.xlu0 %451
        %453 = vrot.lane.b32.xlu0 %v343, 64
        %v454 = vpop.permute.xlu0 %453
        %vm455 = vcmask 64512
        %v457 = vsel %vm455, %v391, 0
        %v460 = vsel %vm455, %v392, 0
        %v462 = vsel %vm455, %v452, 0
        %v464 = vsel %vm455, %v454, 0
        %466 = vmatprep.subr.mxu0 0.0
        %467 = vmatpush1.xpose.msra.mxu0 %v462
        %468 = vmatprep.subr.mxu0 0.0
        %469 = vmatpush1.xpose.msra.mxu0 %v464
        %470 = vmatprep.subr.mxu0 0.0
        %471 = vmatpush1.xpose.msra.mxu0 0.0
        %472 = vmatprep.subr.mxu0 0.0
        %473 = vmatpush1.xpose.msra.mxu0 0.0
        %474 = vmatprep.subr.mxu0 0.0
        %475 = vmatpush1.xpose.msra.mxu0 0.0
        %476 = vmatprep.subr.mxu0 0.0
        %477 = vmatpush1.xpose.msra.mxu0 0.0
        %478 = vmatprep.subr.mxu0 0.0
        %479 = vmatpush1.xpose.msra.mxu0 0.0
        %480 = vmatprep.subr.mxu0 0.0
        %481 = vmatpush1.xpose.msra.mxu0 0.0
        %482 = vmatprep.subr.mxu0 0.0
        %483 = vmatpush1.xpose.msra.mxu0 0.0
        %484 = vmatprep.subr.mxu0 0.0
        %485 = vmatpush1.xpose.msra.mxu0 0.0
        %486 = vmatprep.subr.mxu0 0.0
        %487 = vmatpush1.xpose.msra.mxu0 0.0
        %488 = vmatprep.subr.mxu0 0.0
        %489 = vmatpush1.xpose.msra.mxu0 0.0
        %490 = vmatprep.subr.mxu0 0.0
        %491 = vmatpush1.xpose.msra.mxu0 0.0
        %492 = vmatprep.subr.mxu0 0.0
        %493 = vmatpush1.xpose.msra.mxu0 0.0
        %494 = vmatprep.subr.mxu0 0.0
        %495 = vmatpush1.xpose.msra.mxu0 0.0
        %496 = vmatprep.subr.mxu0 0.0
        %497 = vmatpush1.xpose.msra.mxu0 0.0
        %498 = vmatprep.subr.mxu0 0.0
        %499 = vmatpush1.xpose.msra.mxu0 0.0
        %500 = vmatprep.subr.mxu0 0.0
        %501 = vmatpush1.xpose.msra.mxu0 0.0
        %502 = vmatprep.subr.mxu0 0.0
        %503 = vmatpush1.xpose.msra.mxu0 0.0
        %504 = vmatprep.subr.mxu0 0.0
        %505 = vmatpush1.xpose.msra.mxu0 0.0
        %506 = vmatprep.subr.mxu0 0.0
        %507 = vmatpush1.xpose.msra.mxu0 0.0
        %508 = vmatprep.subr.mxu0 0.0
        %509 = vmatpush1.xpose.msra.mxu0 0.0
        %510 = vmatprep.subr.mxu0 0.0
        %511 = vmatpush1.xpose.msra.mxu0 0.0
        %512 = vmatprep.subr.mxu0 0.0
        %513 = vmatpush1.xpose.msra.mxu0 0.0
        %514 = vmatprep.subr.mxu0 0.0
        %515 = vmatpush1.xpose.msra.mxu0 0.0
        %516 = vmatprep.subr.mxu0 0.0
        %517 = vmatpush1.xpose.msra.mxu0 0.0
        %518 = vmatprep.subr.mxu0 0.0
        %519 = vmatpush1.xpose.msra.mxu0 0.0
        %520 = vmatprep.subr.mxu0 0.0
        %521 = vmatpush1.xpose.msra.mxu0 0.0
        %522 = vmatprep.subr.mxu0 0.0
        %523 = vmatpush1.xpose.msra.mxu0 0.0
        %524 = vmatprep.subr.mxu0 0.0
        %525 = vmatpush1.xpose.msra.mxu0 0.0
        %526 = vmatprep.subr.mxu0 0.0
        %527 = vmatpush1.xpose.msra.mxu0 0.0
        %528 = vmatprep.subr.mxu0 0.0
        %529 = vmatpush1.xpose.msra.mxu0 0.0
        %530 = vmatprep.mubr.f32.mxu0 0.0
        %531 = vmatmul.mubr.f32.gmra.mrb[0].mxu0 %v457
        %v532 = vpop.f32.mrb[0].mxu0
        %v533 = vadd.f32 0.0, %v532
        %v534 = vpop.f32.mrb[0].mxu0
        %535 = vmatprep.mubr.f32.mxu0 0.0
        %536 = vmatmul.mubr.f32.gmra.mrb[0].mxu0 %v460
        %v537 = vpop.f32.mrb[0].mxu0
        %v538 = vadd.f32 0.0, %v537
        %v539 = vpop.f32.mrb[0].mxu0
        %540 = vdwg.mxu0
        %541 = vrot.lane.b32.xlu0 %v350, 64
        %v542 = vpop.permute.xlu0 %541
        %543 = vrot.lane.b32.xlu0 %v352, 64
        %v544 = vpop.permute.xlu0 %543
        %v546 = vsel %vm455, %v393, 0
        %v549 = vsel %vm455, %v394, 0
        %v551 = vsel %vm455, %v542, 0
        %v553 = vsel %vm455, %v544, 0
        %555 = vmatprep.subr.mxu0 0.0
        %556 = vmatpush1.xpose.msra.mxu0 %v551
        %557 = vmatprep.subr.mxu0 0.0
        %558 = vmatpush1.xpose.msra.mxu0 %v553
        %559 = vmatprep.subr.mxu0 0.0
        %560 = vmatpush1.xpose.msra.mxu0 0.0
        %561 = vmatprep.subr.mxu0 0.0
        %562 = vmatpush1.xpose.msra.mxu0 0.0
        %563 = vmatprep.subr.mxu0 0.0
        %564 = vmatpush1.xpose.msra.mxu0 0.0
        %565 = vmatprep.subr.mxu0 0.0
        %566 = vmatpush1.xpose.msra.mxu0 0.0
        %567 = vmatprep.subr.mxu0 0.0
        %568 = vmatpush1.xpose.msra.mxu0 0.0
        %569 = vmatprep.subr.mxu0 0.0
        %570 = vmatpush1.xpose.msra.mxu0 0.0
        %571 = vmatprep.subr.mxu0 0.0
        %572 = vmatpush1.xpose.msra.mxu0 0.0
        %573 = vmatprep.subr.mxu0 0.0
        %574 = vmatpush1.xpose.msra.mxu0 0.0
        %575 = vmatprep.subr.mxu0 0.0
        %576 = vmatpush1.xpose.msra.mxu0 0.0
        %577 = vmatprep.subr.mxu0 0.0
        %578 = vmatpush1.xpose.msra.mxu0 0.0
        %579 = vmatprep.subr.mxu0 0.0
        %580 = vmatpush1.xpose.msra.mxu0 0.0
        %581 = vmatprep.subr.mxu0 0.0
        %582 = vmatpush1.xpose.msra.mxu0 0.0
        %583 = vmatprep.subr.mxu0 0.0
        %584 = vmatpush1.xpose.msra.mxu0 0.0
        %585 = vmatprep.subr.mxu0 0.0
        %586 = vmatpush1.xpose.msra.mxu0 0.0
        %587 = vmatprep.subr.mxu0 0.0
        %588 = vmatpush1.xpose.msra.mxu0 0.0
        %589 = vmatprep.subr.mxu0 0.0
        %590 = vmatpush1.xpose.msra.mxu0 0.0
        %591 = vmatprep.subr.mxu0 0.0
        %592 = vmatpush1.xpose.msra.mxu0 0.0
        %593 = vmatprep.subr.mxu0 0.0
        %594 = vmatpush1.xpose.msra.mxu0 0.0
        %595 = vmatprep.subr.mxu0 0.0
        %596 = vmatpush1.xpose.msra.mxu0 0.0
        %597 = vmatprep.subr.mxu0 0.0
        %598 = vmatpush1.xpose.msra.mxu0 0.0
        %599 = vmatprep.subr.mxu0 0.0
        %600 = vmatpush1.xpose.msra.mxu0 0.0
        %601 = vmatprep.subr.mxu0 0.0
        %602 = vmatpush1.xpose.msra.mxu0 0.0
        %603 = vmatprep.subr.mxu0 0.0
        %604 = vmatpush1.xpose.msra.mxu0 0.0
        %605 = vmatprep.subr.mxu0 0.0
        %606 = vmatpush1.xpose.msra.mxu0 0.0
        %607 = vmatprep.subr.mxu0 0.0
        %608 = vmatpush1.xpose.msra.mxu0 0.0
        %609 = vmatprep.subr.mxu0 0.0
        %610 = vmatpush1.xpose.msra.mxu0 0.0
        %611 = vmatprep.subr.mxu0 0.0
        %612 = vmatpush1.xpose.msra.mxu0 0.0
        %613 = vmatprep.subr.mxu0 0.0
        %614 = vmatpush1.xpose.msra.mxu0 0.0
        %615 = vmatprep.subr.mxu0 0.0
        %616 = vmatpush1.xpose.msra.mxu0 0.0
        %617 = vmatprep.subr.mxu0 0.0
        %618 = vmatpush1.xpose.msra.mxu0 0.0
        %619 = vmatprep.mubr.f32.mxu0 0.0
        %620 = vmatmul.mubr.f32.gmra.mrb[0].mxu0 %v546
        %v621 = vpop.f32.mrb[0].mxu0
        %v622 = vadd.f32 0.0, %v621
        %v623 = vpop.f32.mrb[0].mxu0
        %624 = vmatprep.mubr.f32.mxu0 0.0
        %625 = vmatmul.mubr.f32.gmra.mrb[0].mxu0 %v549
        %v626 = vpop.f32.mrb[0].mxu0
        %v627 = vadd.f32 0.0, %v626
        %v628 = vpop.f32.mrb[0].mxu0
        %629 = vdwg.mxu0
        %630 = vrot.lane.b32.xlu0 %v356, 64
        %v631 = vpop.permute.xlu0 %630
        %632 = vrot.lane.b32.xlu0 %v358, 64
        %v633 = vpop.permute.xlu0 %632
        %v635 = vsel %vm455, %v395, 0
        %v638 = vsel %vm455, %v396, 0
        %v640 = vsel %vm455, %v631, 0
        %v642 = vsel %vm455, %v633, 0
        %644 = vmatprep.subr.mxu0 0.0
        %645 = vmatpush1.xpose.msra.mxu0 %v640
        %646 = vmatprep.subr.mxu0 0.0
        %647 = vmatpush1.xpose.msra.mxu0 %v642
        %648 = vmatprep.subr.mxu0 0.0
        %649 = vmatpush1.xpose.msra.mxu0 0.0
        %650 = vmatprep.subr.mxu0 0.0
        %651 = vmatpush1.xpose.msra.mxu0 0.0
        %652 = vmatprep.subr.mxu0 0.0
        %653 = vmatpush1.xpose.msra.mxu0 0.0
        %654 = vmatprep.subr.mxu0 0.0
        %655 = vmatpush1.xpose.msra.mxu0 0.0
        %656 = vmatprep.subr.mxu0 0.0
        %657 = vmatpush1.xpose.msra.mxu0 0.0
        %658 = vmatprep.subr.mxu0 0.0
        %659 = vmatpush1.xpose.msra.mxu0 0.0
        %660 = vmatprep.subr.mxu0 0.0
        %661 = vmatpush1.xpose.msra.mxu0 0.0
        %662 = vmatprep.subr.mxu0 0.0
        %663 = vmatpush1.xpose.msra.mxu0 0.0
        %664 = vmatprep.subr.mxu0 0.0
        %665 = vmatpush1.xpose.msra.mxu0 0.0
        %666 = vmatprep.subr.mxu0 0.0
        %667 = vmatpush1.xpose.msra.mxu0 0.0
        %668 = vmatprep.subr.mxu0 0.0
        %669 = vmatpush1.xpose.msra.mxu0 0.0
        %670 = vmatprep.subr.mxu0 0.0
        %671 = vmatpush1.xpose.msra.mxu0 0.0
        %672 = vmatprep.subr.mxu0 0.0
        %673 = vmatpush1.xpose.msra.mxu0 0.0
        %674 = vmatprep.subr.mxu0 0.0
        %675 = vmatpush1.xpose.msra.mxu0 0.0
        %676 = vmatprep.subr.mxu0 0.0
        %677 = vmatpush1.xpose.msra.mxu0 0.0
        %678 = vmatprep.subr.mxu0 0.0
        %679 = vmatpush1.xpose.msra.mxu0 0.0
        %680 = vmatprep.subr.mxu0 0.0
        %681 = vmatpush1.xpose.msra.mxu0 0.0
        %682 = vmatprep.subr.mxu0 0.0
        %683 = vmatpush1.xpose.msra.mxu0 0.0
        %684 = vmatprep.subr.mxu0 0.0
        %685 = vmatpush1.xpose.msra.mxu0 0.0
        %686 = vmatprep.subr.mxu0 0.0
        %687 = vmatpush1.xpose.msra.mxu0 0.0
        %688 = vmatprep.subr.mxu0 0.0
        %689 = vmatpush1.xpose.msra.mxu0 0.0
        %690 = vmatprep.subr.mxu0 0.0
        %691 = vmatpush1.xpose.msra.mxu0 0.0
        %692 = vmatprep.subr.mxu0 0.0
        %693 = vmatpush1.xpose.msra.mxu0 0.0
        %694 = vmatprep.subr.mxu0 0.0
        %695 = vmatpush1.xpose.msra.mxu0 0.0
        %696 = vmatprep.subr.mxu0 0.0
        %697 = vmatpush1.xpose.msra.mxu0 0.0
        %698 = vmatprep.subr.mxu0 0.0
        %699 = vmatpush1.xpose.msra.mxu0 0.0
        %700 = vmatprep.subr.mxu0 0.0
        %701 = vmatpush1.xpose.msra.mxu0 0.0
        %702 = vmatprep.subr.mxu0 0.0
        %703 = vmatpush1.xpose.msra.mxu0 0.0
        %704 = vmatprep.subr.mxu0 0.0
        %705 = vmatpush1.xpose.msra.mxu0 0.0
        %706 = vmatprep.subr.mxu0 0.0
        %707 = vmatpush1.xpose.msra.mxu0 0.0
        %708 = vmatprep.mubr.f32.mxu0 0.0
        %709 = vmatmul.mubr.f32.gmra.mrb[0].mxu0 %v635
        %v710 = vpop.f32.mrb[0].mxu0
        %v711 = vadd.f32 0.0, %v710
        %v712 = vpop.f32.mrb[0].mxu0
        %713 = vmatprep.mubr.f32.mxu0 0.0
        %714 = vmatmul.mubr.f32.gmra.mrb[0].mxu0 %v638
        %v715 = vpop.f32.mrb[0].mxu0
        %v716 = vadd.f32 0.0, %v715
        %v717 = vpop.f32.mrb[0].mxu0
        %718 = vdwg.mxu0
        %719 = vrot.lane.b32.xlu0 %v362, 64
        %v720 = vpop.permute.xlu0 %719
        %721 = vrot.lane.b32.xlu0 %v364, 64
        %v722 = vpop.permute.xlu0 %721
        %v724 = vsel %vm455, %v397, 0
        %v727 = vsel %vm455, %v398, 0
        %v729 = vsel %vm455, %v720, 0
        %v731 = vsel %vm455, %v722, 0
        %733 = vmatprep.subr.mxu0 0.0
        %734 = vmatpush1.xpose.msra.mxu0 %v729
        %735 = vmatprep.subr.mxu0 0.0
        %736 = vmatpush1.xpose.msra.mxu0 %v731
        %737 = vmatprep.subr.mxu0 0.0
        %738 = vmatpush1.xpose.msra.mxu0 0.0
        %739 = vmatprep.subr.mxu0 0.0
        %740 = vmatpush1.xpose.msra.mxu0 0.0
        %741 = vmatprep.subr.mxu0 0.0
        %742 = vmatpush1.xpose.msra.mxu0 0.0
        %743 = vmatprep.subr.mxu0 0.0
        %744 = vmatpush1.xpose.msra.mxu0 0.0
        %745 = vmatprep.subr.mxu0 0.0
        %746 = vmatpush1.xpose.msra.mxu0 0.0
        %747 = vmatprep.subr.mxu0 0.0
        %748 = vmatpush1.xpose.msra.mxu0 0.0
        %749 = vmatprep.subr.mxu0 0.0
        %750 = vmatpush1.xpose.msra.mxu0 0.0
        %751 = vmatprep.subr.mxu0 0.0
        %752 = vmatpush1.xpose.msra.mxu0 0.0
        %753 = vmatprep.subr.mxu0 0.0
        %754 = vmatpush1.xpose.msra.mxu0 0.0
        %755 = vmatprep.subr.mxu0 0.0
        %756 = vmatpush1.xpose.msra.mxu0 0.0
        %757 = vmatprep.subr.mxu0 0.0
        %758 = vmatpush1.xpose.msra.mxu0 0.0
        %759 = vmatprep.subr.mxu0 0.0
        %760 = vmatpush1.xpose.msra.mxu0 0.0
        %761 = vmatprep.subr.mxu0 0.0
        %762 = vmatpush1.xpose.msra.mxu0 0.0
        %763 = vmatprep.subr.mxu0 0.0
        %764 = vmatpush1.xpose.msra.mxu0 0.0
        %765 = vmatprep.subr.mxu0 0.0
        %766 = vmatpush1.xpose.msra.mxu0 0.0
        %767 = vmatprep.subr.mxu0 0.0
        %768 = vmatpush1.xpose.msra.mxu0 0.0
        %769 = vmatprep.subr.mxu0 0.0
        %770 = vmatpush1.xpose.msra.mxu0 0.0
        %771 = vmatprep.subr.mxu0 0.0
        %772 = vmatpush1.xpose.msra.mxu0 0.0
        %773 = vmatprep.subr.mxu0 0.0
        %774 = vmatpush1.xpose.msra.mxu0 0.0
        %775 = vmatprep.subr.mxu0 0.0
        %776 = vmatpush1.xpose.msra.mxu0 0.0
        %777 = vmatprep.subr.mxu0 0.0
        %778 = vmatpush1.xpose.msra.mxu0 0.0
        %779 = vmatprep.subr.mxu0 0.0
        %780 = vmatpush1.xpose.msra.mxu0 0.0
        %781 = vmatprep.subr.mxu0 0.0
        %782 = vmatpush1.xpose.msra.mxu0 0.0
        %783 = vmatprep.subr.mxu0 0.0
        %784 = vmatpush1.xpose.msra.mxu0 0.0
        %785 = vmatprep.subr.mxu0 0.0
        %786 = vmatpush1.xpose.msra.mxu0 0.0
        %787 = vmatprep.subr.mxu0 0.0
        %788 = vmatpush1.xpose.msra.mxu0 0.0
        %789 = vmatprep.subr.mxu0 0.0
        %790 = vmatpush1.xpose.msra.mxu0 0.0
        %791 = vmatprep.subr.mxu0 0.0
        %792 = vmatpush1.xpose.msra.mxu0 0.0
        %793 = vmatprep.subr.mxu0 0.0
        %794 = vmatpush1.xpose.msra.mxu0 0.0
        %795 = vmatprep.subr.mxu0 0.0
        %796 = vmatpush1.xpose.msra.mxu0 0.0
        %797 = vmatprep.mubr.f32.mxu0 0.0
        %798 = vmatmul.mubr.f32.gmra.mrb[0].mxu0 %v724
        %v799 = vpop.f32.mrb[0].mxu0
        %v800 = vadd.f32 0.0, %v799
        %v801 = vpop.f32.mrb[0].mxu0
        %802 = vmatprep.mubr.f32.mxu0 0.0
        %803 = vmatmul.mubr.f32.gmra.mrb[0].mxu0 %v727
        %v804 = vpop.f32.mrb[0].mxu0
        %v805 = vadd.f32 0.0, %v804
        %v806 = vpop.f32.mrb[0].mxu0
        %807 = vdwg.mxu0
        %808 = vrot.lane.b32.xlu0 %v368, 64
        %v809 = vpop.permute.xlu0 %808
        %810 = vrot.lane.b32.xlu0 %v370, 64
        %v811 = vpop.permute.xlu0 %810
        %v813 = vsel %vm455, %v399, 0
        %v816 = vsel %vm455, %v400, 0
        %v818 = vsel %vm455, %v809, 0
        %v820 = vsel %vm455, %v811, 0
        %822 = vmatprep.subr.mxu0 0.0
        %823 = vmatpush1.xpose.msra.mxu0 %v818
        %824 = vmatprep.subr.mxu0 0.0
        %825 = vmatpush1.xpose.msra.mxu0 %v820
        %826 = vmatprep.subr.mxu0 0.0
        %827 = vmatpush1.xpose.msra.mxu0 0.0
        %828 = vmatprep.subr.mxu0 0.0
        %829 = vmatpush1.xpose.msra.mxu0 0.0
        %830 = vmatprep.subr.mxu0 0.0
        %831 = vmatpush1.xpose.msra.mxu0 0.0
        %832 = vmatprep.subr.mxu0 0.0
        %833 = vmatpush1.xpose.msra.mxu0 0.0
        %834 = vmatprep.subr.mxu0 0.0
        %835 = vmatpush1.xpose.msra.mxu0 0.0
        %836 = vmatprep.subr.mxu0 0.0
        %837 = vmatpush1.xpose.msra.mxu0 0.0
        %838 = vmatprep.subr.mxu0 0.0
        %839 = vmatpush1.xpose.msra.mxu0 0.0
        %840 = vmatprep.subr.mxu0 0.0
        %841 = vmatpush1.xpose.msra.mxu0 0.0
        %842 = vmatprep.subr.mxu0 0.0
        %843 = vmatpush1.xpose.msra.mxu0 0.0
        %844 = vmatprep.subr.mxu0 0.0
        %845 = vmatpush1.xpose.msra.mxu0 0.0
        %846 = vmatprep.subr.mxu0 0.0
        %847 = vmatpush1.xpose.msra.mxu0 0.0
        %848 = vmatprep.subr.mxu0 0.0
        %849 = vmatpush1.xpose.msra.mxu0 0.0
        %850 = vmatprep.subr.mxu0 0.0
        %851 = vmatpush1.xpose.msra.mxu0 0.0
        %852 = vmatprep.subr.mxu0 0.0
        %853 = vmatpush1.xpose.msra.mxu0 0.0
        %854 = vmatprep.subr.mxu0 0.0
        %855 = vmatpush1.xpose.msra.mxu0 0.0
        %856 = vmatprep.subr.mxu0 0.0
        %857 = vmatpush1.xpose.msra.mxu0 0.0
        %858 = vmatprep.subr.mxu0 0.0
        %859 = vmatpush1.xpose.msra.mxu0 0.0
        %860 = vmatprep.subr.mxu0 0.0
        %861 = vmatpush1.xpose.msra.mxu0 0.0
        %862 = vmatprep.subr.mxu0 0.0
        %863 = vmatpush1.xpose.msra.mxu0 0.0
        %864 = vmatprep.subr.mxu0 0.0
        %865 = vmatpush1.xpose.msra.mxu0 0.0
        %866 = vmatprep.subr.mxu0 0.0
        %867 = vmatpush1.xpose.msra.mxu0 0.0
        %868 = vmatprep.subr.mxu0 0.0
        %869 = vmatpush1.xpose.msra.mxu0 0.0
        %870 = vmatprep.subr.mxu0 0.0
        %871 = vmatpush1.xpose.msra.mxu0 0.0
        %872 = vmatprep.subr.mxu0 0.0
        %873 = vmatpush1.xpose.msra.mxu0 0.0
        %874 = vmatprep.subr.mxu0 0.0
        %875 = vmatpush1.xpose.msra.mxu0 0.0
        %876 = vmatprep.subr.mxu0 0.0
        %877 = vmatpush1.xpose.msra.mxu0 0.0
        %878 = vmatprep.subr.mxu0 0.0
        %879 = vmatpush1.xpose.msra.mxu0 0.0
        %880 = vmatprep.subr.mxu0 0.0
        %881 = vmatpush1.xpose.msra.mxu0 0.0
        %882 = vmatprep.subr.mxu0 0.0
        %883 = vmatpush1.xpose.msra.mxu0 0.0
        %884 = vmatprep.subr.mxu0 0.0
        %885 = vmatpush1.xpose.msra.mxu0 0.0
        %886 = vmatprep.mubr.f32.mxu0 0.0
        %887 = vmatmul.mubr.f32.gmra.mrb[0].mxu0 %v813
        %v888 = vpop.f32.mrb[0].mxu0
        %v889 = vadd.f32 0.0, %v888
        %v890 = vpop.f32.mrb[0].mxu0
        %891 = vmatprep.mubr.f32.mxu0 0.0
        %892 = vmatmul.mubr.f32.gmra.mrb[0].mxu0 %v816
        %v893 = vpop.f32.mrb[0].mxu0
        %v894 = vadd.f32 0.0, %v893
        %v895 = vpop.f32.mrb[0].mxu0
        %896 = vdwg.mxu0
        %897 = vrot.lane.b32.xlu0 %v374, 64
        %v898 = vpop.permute.xlu0 %897
        %899 = vrot.lane.b32.xlu0 %v376, 64
        %v900 = vpop.permute.xlu0 %899
        %v902 = vsel %vm455, %v401, 0
        %v905 = vsel %vm455, %v402, 0
        %v907 = vsel %vm455, %v898, 0
        %v909 = vsel %vm455, %v900, 0
        %911 = vmatprep.subr.mxu0 0.0
        %912 = vmatpush1.xpose.msra.mxu0 %v907
        %913 = vmatprep.subr.mxu0 0.0
        %914 = vmatpush1.xpose.msra.mxu0 %v909
        %915 = vmatprep.subr.mxu0 0.0
        %916 = vmatpush1.xpose.msra.mxu0 0.0
        %917 = vmatprep.subr.mxu0 0.0
        %918 = vmatpush1.xpose.msra.mxu0 0.0
        %919 = vmatprep.subr.mxu0 0.0
        %920 = vmatpush1.xpose.msra.mxu0 0.0
        %921 = vmatprep.subr.mxu0 0.0
        %922 = vmatpush1.xpose.msra.mxu0 0.0
        %923 = vmatprep.subr.mxu0 0.0
        %924 = vmatpush1.xpose.msra.mxu0 0.0
        %925 = vmatprep.subr.mxu0 0.0
        %926 = vmatpush1.xpose.msra.mxu0 0.0
        %927 = vmatprep.subr.mxu0 0.0
        %928 = vmatpush1.xpose.msra.mxu0 0.0
        %929 = vmatprep.subr.mxu0 0.0
        %930 = vmatpush1.xpose.msra.mxu0 0.0
        %931 = vmatprep.subr.mxu0 0.0
        %932 = vmatpush1.xpose.msra.mxu0 0.0
        %933 = vmatprep.subr.mxu0 0.0
        %934 = vmatpush1.xpose.msra.mxu0 0.0
        %935 = vmatprep.subr.mxu0 0.0
        %936 = vmatpush1.xpose.msra.mxu0 0.0
        %937 = vmatprep.subr.mxu0 0.0
        %938 = vmatpush1.xpose.msra.mxu0 0.0
        %939 = vmatprep.subr.mxu0 0.0
        %940 = vmatpush1.xpose.msra.mxu0 0.0
        %941 = vmatprep.subr.mxu0 0.0
        %942 = vmatpush1.xpose.msra.mxu0 0.0
        %943 = vmatprep.subr.mxu0 0.0
        %944 = vmatpush1.xpose.msra.mxu0 0.0
        %945 = vmatprep.subr.mxu0 0.0
        %946 = vmatpush1.xpose.msra.mxu0 0.0
        %947 = vmatprep.subr.mxu0 0.0
        %948 = vmatpush1.xpose.msra.mxu0 0.0
        %949 = vmatprep.subr.mxu0 0.0
        %950 = vmatpush1.xpose.msra.mxu0 0.0
        %951 = vmatprep.subr.mxu0 0.0
        %952 = vmatpush1.xpose.msra.mxu0 0.0
        %953 = vmatprep.subr.mxu0 0.0
        %954 = vmatpush1.xpose.msra.mxu0 0.0
        %955 = vmatprep.subr.mxu0 0.0
        %956 = vmatpush1.xpose.msra.mxu0 0.0
        %957 = vmatprep.subr.mxu0 0.0
        %958 = vmatpush1.xpose.msra.mxu0 0.0
        %959 = vmatprep.subr.mxu0 0.0
        %960 = vmatpush1.xpose.msra.mxu0 0.0
        %961 = vmatprep.subr.mxu0 0.0
        %962 = vmatpush1.xpose.msra.mxu0 0.0
        %963 = vmatprep.subr.mxu0 0.0
        %964 = vmatpush1.xpose.msra.mxu0 0.0
        %965 = vmatprep.subr.mxu0 0.0
        %966 = vmatpush1.xpose.msra.mxu0 0.0
        %967 = vmatprep.subr.mxu0 0.0
        %968 = vmatpush1.xpose.msra.mxu0 0.0
        %969 = vmatprep.subr.mxu0 0.0
        %970 = vmatpush1.xpose.msra.mxu0 0.0
        %971 = vmatprep.subr.mxu0 0.0
        %972 = vmatpush1.xpose.msra.mxu0 0.0
        %973 = vmatprep.subr.mxu0 0.0
        %974 = vmatpush1.xpose.msra.mxu0 0.0
        %975 = vmatprep.mubr.f32.mxu0 0.0
        %976 = vmatmul.mubr.f32.gmra.mrb[0].mxu0 %v902
        %v977 = vpop.f32.mrb[0].mxu0
        %v978 = vadd.f32 0.0, %v977
        %v979 = vpop.f32.mrb[0].mxu0
        %980 = vmatprep.mubr.f32.mxu0 0.0
        %981 = vmatmul.mubr.f32.gmra.mrb[0].mxu0 %v905
        %v982 = vpop.f32.mrb[0].mxu0
        %v983 = vadd.f32 0.0, %v982
        %v984 = vpop.f32.mrb[0].mxu0
        %985 = vdwg.mxu0
        %986 = vrot.lane.b32.xlu0 %v380, 64
        %v987 = vpop.permute.xlu0 %986
        %988 = vrot.lane.b32.xlu0 %v382, 64
        %v989 = vpop.permute.xlu0 %988
        %v991 = vsel %vm455, %v403, 0
        %v994 = vsel %vm455, %v404, 0
        %v996 = vsel %vm455, %v987, 0
        %v998 = vsel %vm455, %v989, 0
        %1000 = vmatprep.subr.mxu0 0.0
        %1001 = vmatpush1.xpose.msra.mxu0 %v996
        %1002 = vmatprep.subr.mxu0 0.0
        %1003 = vmatpush1.xpose.msra.mxu0 %v998
        %1004 = vmatprep.subr.mxu0 0.0
        %1005 = vmatpush1.xpose.msra.mxu0 0.0
        %1006 = vmatprep.subr.mxu0 0.0
        %1007 = vmatpush1.xpose.msra.mxu0 0.0
        %1008 = vmatprep.subr.mxu0 0.0
        %1009 = vmatpush1.xpose.msra.mxu0 0.0
        %1010 = vmatprep.subr.mxu0 0.0
        %1011 = vmatpush1.xpose.msra.mxu0 0.0
        %1012 = vmatprep.subr.mxu0 0.0
        %1013 = vmatpush1.xpose.msra.mxu0 0.0
        %1014 = vmatprep.subr.mxu0 0.0
        %1015 = vmatpush1.xpose.msra.mxu0 0.0
        %1016 = vmatprep.subr.mxu0 0.0
        %1017 = vmatpush1.xpose.msra.mxu0 0.0
        %1018 = vmatprep.subr.mxu0 0.0
        %1019 = vmatpush1.xpose.msra.mxu0 0.0
        %1020 = vmatprep.subr.mxu0 0.0
        %1021 = vmatpush1.xpose.msra.mxu0 0.0
        %1022 = vmatprep.subr.mxu0 0.0
        %1023 = vmatpush1.xpose.msra.mxu0 0.0
        %1024 = vmatprep.subr.mxu0 0.0
        %1025 = vmatpush1.xpose.msra.mxu0 0.0
        %1026 = vmatprep.subr.mxu0 0.0
        %1027 = vmatpush1.xpose.msra.mxu0 0.0
        %1028 = vmatprep.subr.mxu0 0.0
        %1029 = vmatpush1.xpose.msra.mxu0 0.0
        %1030 = vmatprep.subr.mxu0 0.0
        %1031 = vmatpush1.xpose.msra.mxu0 0.0
        %1032 = vmatprep.subr.mxu0 0.0
        %1033 = vmatpush1.xpose.msra.mxu0 0.0
        %1034 = vmatprep.subr.mxu0 0.0
        %1035 = vmatpush1.xpose.msra.mxu0 0.0
        %1036 = vmatprep.subr.mxu0 0.0
        %1037 = vmatpush1.xpose.msra.mxu0 0.0
        %1038 = vmatprep.subr.mxu0 0.0
        %1039 = vmatpush1.xpose.msra.mxu0 0.0
        %1040 = vmatprep.subr.mxu0 0.0
        %1041 = vmatpush1.xpose.msra.mxu0 0.0
        %1042 = vmatprep.subr.mxu0 0.0
        %1043 = vmatpush1.xpose.msra.mxu0 0.0
        %1044 = vmatprep.subr.mxu0 0.0
        %1045 = vmatpush1.xpose.msra.mxu0 0.0
        %1046 = vmatprep.subr.mxu0 0.0
        %1047 = vmatpush1.xpose.msra.mxu0 0.0
        %1048 = vmatprep.subr.mxu0 0.0
        %1049 = vmatpush1.xpose.msra.mxu0 0.0
        %1050 = vmatprep.subr.mxu0 0.0
        %1051 = vmatpush1.xpose.msra.mxu0 0.0
        %1052 = vmatprep.subr.mxu0 0.0
        %1053 = vmatpush1.xpose.msra.mxu0 0.0
        %1054 = vmatprep.subr.mxu0 0.0
        %1055 = vmatpush1.xpose.msra.mxu0 0.0
        %1056 = vmatprep.subr.mxu0 0.0
        %1057 = vmatpush1.xpose.msra.mxu0 0.0
        %1058 = vmatprep.subr.mxu0 0.0
        %1059 = vmatpush1.xpose.msra.mxu0 0.0
        %1060 = vmatprep.subr.mxu0 0.0
        %1061 = vmatpush1.xpose.msra.mxu0 0.0
        %1062 = vmatprep.subr.mxu0 0.0
        %1063 = vmatpush1.xpose.msra.mxu0 0.0
        %1064 = vmatprep.mubr.f32.mxu0 0.0
        %1065 = vmatmul.mubr.f32.gmra.mrb[0].mxu0 %v991
        %v1066 = vpop.f32.mrb[0].mxu0
        %v1067 = vadd.f32 0.0, %v1066
        %v1068 = vpop.f32.mrb[0].mxu0
        %1069 = vmatprep.mubr.f32.mxu0 0.0
        %1070 = vmatmul.mubr.f32.gmra.mrb[0].mxu0 %v994
        %v1071 = vpop.f32.mrb[0].mxu0
        %v1072 = vadd.f32 0.0, %v1071
        %v1073 = vpop.f32.mrb[0].mxu0
        %1074 = vdwg.mxu0
        %1075 = vrot.lane.b32.xlu0 %v386, 64
        %v1076 = vpop.permute.xlu0 %1075
        %1077 = vrot.lane.b32.xlu0 %v388, 64
        %v1078 = vpop.permute.xlu0 %1077
        %v1080 = vsel %vm455, %v405, 0
        %v1083 = vsel %vm455, %v406, 0
        %v1085 = vsel %vm455, %v1076, 0
        %v1087 = vsel %vm455, %v1078, 0
        %1089 = vmatprep.subr.mxu0 0.0
        %1090 = vmatpush1.xpose.msra.mxu0 %v1085
        %1091 = vmatprep.subr.mxu0 0.0
        %1092 = vmatpush1.xpose.msra.mxu0 %v1087
        %1093 = vmatprep.subr.mxu0 0.0
        %1094 = vmatpush1.xpose.msra.mxu0 0.0
        %1095 = vmatprep.subr.mxu0 0.0
        %1096 = vmatpush1.xpose.msra.mxu0 0.0
        %1097 = vmatprep.subr.mxu0 0.0
        %1098 = vmatpush1.xpose.msra.mxu0 0.0
        %1099 = vmatprep.subr.mxu0 0.0
        %1100 = vmatpush1.xpose.msra.mxu0 0.0
        %1101 = vmatprep.subr.mxu0 0.0
        %1102 = vmatpush1.xpose.msra.mxu0 0.0
        %1103 = vmatprep.subr.mxu0 0.0
        %1104 = vmatpush1.xpose.msra.mxu0 0.0
        %1105 = vmatprep.subr.mxu0 0.0
        %1106 = vmatpush1.xpose.msra.mxu0 0.0
        %1107 = vmatprep.subr.mxu0 0.0
        %1108 = vmatpush1.xpose.msra.mxu0 0.0
        %1109 = vmatprep.subr.mxu0 0.0
        %1110 = vmatpush1.xpose.msra.mxu0 0.0
        %1111 = vmatprep.subr.mxu0 0.0
        %1112 = vmatpush1.xpose.msra.mxu0 0.0
        %1113 = vmatprep.subr.mxu0 0.0
        %1114 = vmatpush1.xpose.msra.mxu0 0.0
        %1115 = vmatprep.subr.mxu0 0.0
        %1116 = vmatpush1.xpose.msra.mxu0 0.0
        %1117 = vmatprep.subr.mxu0 0.0
        %1118 = vmatpush1.xpose.msra.mxu0 0.0
        %1119 = vmatprep.subr.mxu0 0.0
        %1120 = vmatpush1.xpose.msra.mxu0 0.0
        %1121 = vmatprep.subr.mxu0 0.0
        %1122 = vmatpush1.xpose.msra.mxu0 0.0
        %1123 = vmatprep.subr.mxu0 0.0
        %1124 = vmatpush1.xpose.msra.mxu0 0.0
        %1125 = vmatprep.subr.mxu0 0.0
        %1126 = vmatpush1.xpose.msra.mxu0 0.0
        %1127 = vmatprep.subr.mxu0 0.0
        %1128 = vmatpush1.xpose.msra.mxu0 0.0
        %1129 = vmatprep.subr.mxu0 0.0
        %1130 = vmatpush1.xpose.msra.mxu0 0.0
        %1131 = vmatprep.subr.mxu0 0.0
        %1132 = vmatpush1.xpose.msra.mxu0 0.0
        %1133 = vmatprep.subr.mxu0 0.0
        %1134 = vmatpush1.xpose.msra.mxu0 0.0
        %1135 = vmatprep.subr.mxu0 0.0
        %1136 = vmatpush1.xpose.msra.mxu0 0.0
        %1137 = vmatprep.subr.mxu0 0.0
        %1138 = vmatpush1.xpose.msra.mxu0 0.0
        %1139 = vmatprep.subr.mxu0 0.0
        %1140 = vmatpush1.xpose.msra.mxu0 0.0
        %1141 = vmatprep.subr.mxu0 0.0
        %1142 = vmatpush1.xpose.msra.mxu0 0.0
        %1143 = vmatprep.subr.mxu0 0.0
        %1144 = vmatpush1.xpose.msra.mxu0 0.0
        %1145 = vmatprep.subr.mxu0 0.0
        %1146 = vmatpush1.xpose.msra.mxu0 0.0
        %1147 = vmatprep.subr.mxu0 0.0
        %1148 = vmatpush1.xpose.msra.mxu0 0.0
        %1149 = vmatprep.subr.mxu0 0.0
        %1150 = vmatpush1.xpose.msra.mxu0 0.0
        %1151 = vmatprep.subr.mxu0 0.0
        %1152 = vmatpush1.xpose.msra.mxu0 0.0
        %1153 = vmatprep.mubr.f32.mxu0 0.0
        %1154 = vmatmul.mubr.f32.gmra.mrb[0].mxu0 %v1080
        %v1155 = vpop.f32.mrb[0].mxu0
        %v1156 = vadd.f32 0.0, %v1155
        %v1157 = vpop.f32.mrb[0].mxu0
        %1158 = vmatprep.mubr.f32.mxu0 0.0
        %1159 = vmatmul.mubr.f32.gmra.mrb[0].mxu0 %v1083
        %v1160 = vpop.f32.mrb[0].mxu0
        %v1161 = vadd.f32 0.0, %v1160
        %v1162 = vpop.f32.mrb[0].mxu0
        %1163 = vdwg.mxu0
        %vm1164 = vcmask 130048
        %v1165 = vsel %vm1164, %v533, -inf
        %1166 = vmax.xlane.f32.xlu0 %v1165
        %v1167 = vpop.xlane.xlu0 %1166
        %v1168 = vsel %vm1164, %v538, -inf
        %1169 = vmax.xlane.f32.xlu0 %v1168
        %v1170 = vpop.xlane.xlu0 %1169
        %v1171 = vsel %vm1164, %v622, -inf
        %1172 = vmax.xlane.f32.xlu0 %v1171
        %v1173 = vpop.xlane.xlu0 %1172
        %v1174 = vsel %vm1164, %v627, -inf
        %1175 = vmax.xlane.f32.xlu0 %v1174
        %v1176 = vpop.xlane.xlu0 %1175
        %v1177 = vsel %vm1164, %v711, -inf
        %1178 = vmax.xlane.f32.xlu0 %v1177
        %v1179 = vpop.xlane.xlu0 %1178
        %v1180 = vsel %vm1164, %v716, -inf
        %1181 = vmax.xlane.f32.xlu0 %v1180
        %v1182 = vpop.xlane.xlu0 %1181
        %v1183 = vsel %vm1164, %v800, -inf
        %1184 = vmax.xlane.f32.xlu0 %v1183
        %v1185 = vpop.xlane.xlu0 %1184
        %v1186 = vsel %vm1164, %v805, -inf
        %1187 = vmax.xlane.f32.xlu0 %v1186
        %v1188 = vpop.xlane.xlu0 %1187
        %v1189 = vsel %vm1164, %v889, -inf
        %1190 = vmax.xlane.f32.xlu0 %v1189
        %v1191 = vpop.xlane.xlu0 %1190
        %v1192 = vsel %vm1164, %v894, -inf
        %1193 = vmax.xlane.f32.xlu0 %v1192
        %v1194 = vpop.xlane.xlu0 %1193
        %v1195 = vsel %vm1164, %v978, -inf
        %1196 = vmax.xlane.f32.xlu0 %v1195
        %v1197 = vpop.xlane.xlu0 %1196
        %v1198 = vsel %vm1164, %v983, -inf
        %1199 = vmax.xlane.f32.xlu0 %v1198
        %v1200 = vpop.xlane.xlu0 %1199
        %v1201 = vsel %vm1164, %v1067, -inf
        %1202 = vmax.xlane.f32.xlu0 %v1201
        %v1203 = vpop.xlane.xlu0 %1202
        %v1204 = vsel %vm1164, %v1072, -inf
        %1205 = vmax.xlane.f32.xlu0 %v1204
        %v1206 = vpop.xlane.xlu0 %1205
        %v1207 = vsel %vm1164, %v1156, -inf
        %1208 = vmax.xlane.f32.xlu0 %v1207
        %v1209 = vpop.xlane.xlu0 %1208
        %v1210 = vsel %vm1164, %v1161, -inf
        %1211 = vmax.xlane.f32.xlu0 %v1210
        %v1212 = vpop.xlane.xlu0 %1211
        %v1213 = vsub.f32 %v533, %v1167
        %v1214 = vsub.f32 %v538, %v1170
        %v1215 = vsub.f32 %v622, %v1173
        %v1216 = vsub.f32 %v627, %v1176
        %v1217 = vsub.f32 %v711, %v1179
        %v1218 = vsub.f32 %v716, %v1182
        %v1219 = vsub.f32 %v800, %v1185
        %v1220 = vsub.f32 %v805, %v1188
        %v1221 = vsub.f32 %v889, %v1191
        %v1222 = vsub.f32 %v894, %v1194
        %v1223 = vsub.f32 %v978, %v1197
        %v1224 = vsub.f32 %v983, %v1200
        %v1225 = vsub.f32 %v1067, %v1203
        %v1226 = vsub.f32 %v1072, %v1206
        %v1227 = vsub.f32 %v1156, %v1209
        %v1228 = vsub.f32 %v1161, %v1212
        %v1229 = vmul.f32 %v1213, 1.442695
        %v1230 = vpow.pop %v1229
        %v1231 = vmul.f32 %v1214, 1.442695
        %v1232 = vpow.pop %v1231
        %v1233 = vmul.f32 %v1215, 1.442695
        %v1234 = vpow.pop %v1233
        %v1235 = vmul.f32 %v1216, 1.442695
        %v1236 = vpow.pop %v1235
        %v1237 = vmul.f32 %v1217, 1.442695
        %v1238 = vpow.pop %v1237
        %v1239 = vmul.f32 %v1218, 1.442695
        %v1240 = vpow.pop %v1239
        %v1241 = vmul.f32 %v1219, 1.442695
        %v1242 = vpow.pop %v1241
        %v1243 = vmul.f32 %v1220, 1.442695
        %v1244 = vpow.pop %v1243
        %v1245 = vmul.f32 %v1221, 1.442695
        %v1246 = vpow.pop %v1245
        %v1247 = vmul.f32 %v1222, 1.442695
        %v1248 = vpow.pop %v1247
        %v1249 = vmul.f32 %v1223, 1.442695
        %v1250 = vpow.pop %v1249
        %v1251 = vmul.f32 %v1224, 1.442695
        %v1252 = vpow.pop %v1251
        %v1253 = vmul.f32 %v1225, 1.442695
        %v1254 = vpow.pop %v1253
        %v1255 = vmul.f32 %v1226, 1.442695
        %v1256 = vpow.pop %v1255
        %v1257 = vmul.f32 %v1227, 1.442695
        %v1258 = vpow.pop %v1257
        %v1259 = vmul.f32 %v1228, 1.442695
        %v1260 = vpow.pop %v1259
        %v1261 = vsel %vm1164, %v1230, 0.0
        %1262 = vadd.xlane.f32.xlu0 %v1261
        %v1263 = vpop.xlane.xlu0 %1262
        %v1264 = vsel %vm1164, %v1232, 0.0
        %1265 = vadd.xlane.f32.xlu0 %v1264
        %v1266 = vpop.xlane.xlu0 %1265
        %v1267 = vsel %vm1164, %v1234, 0.0
        %1268 = vadd.xlane.f32.xlu0 %v1267
        %v1269 = vpop.xlane.xlu0 %1268
        %v1270 = vsel %vm1164, %v1236, 0.0
        %1271 = vadd.xlane.f32.xlu0 %v1270
        %v1272 = vpop.xlane.xlu0 %1271
        %v1273 = vsel %vm1164, %v1238, 0.0
        %1274 = vadd.xlane.f32.xlu0 %v1273
        %v1275 = vpop.xlane.xlu0 %1274
        %v1276 = vsel %vm1164, %v1240, 0.0
        %1277 = vadd.xlane.f32.xlu0 %v1276
        %v1278 = vpop.xlane.xlu0 %1277
        %v1279 = vsel %vm1164, %v1242, 0.0
        %1280 = vadd.xlane.f32.xlu0 %v1279
        %v1281 = vpop.xlane.xlu0 %1280
        %v1282 = vsel %vm1164, %v1244, 0.0
        %1283 = vadd.xlane.f32.xlu0 %v1282
        %v1284 = vpop.xlane.xlu0 %1283
        %v1285 = vsel %vm1164, %v1246, 0.0
        %1286 = vadd.xlane.f32.xlu0 %v1285
        %v1287 = vpop.xlane.xlu0 %1286
        %v1288 = vsel %vm1164, %v1248, 0.0
        %1289 = vadd.xlane.f32.xlu0 %v1288
        %v1290 = vpop.xlane.xlu0 %1289
        %v1291 = vsel %vm1164, %v1250, 0.0
        %1292 = vadd.xlane.f32.xlu0 %v1291
        %v1293 = vpop.xlane.xlu0 %1292
        %v1294 = vsel %vm1164, %v1252, 0.0
        %1295 = vadd.xlane.f32.xlu0 %v1294
        %v1296 = vpop.xlane.xlu0 %1295
        %v1297 = vsel %vm1164, %v1254, 0.0
        %1298 = vadd.xlane.f32.xlu0 %v1297
        %v1299 = vpop.xlane.xlu0 %1298
        %v1300 = vsel %vm1164, %v1256, 0.0
        %1301 = vadd.xlane.f32.xlu0 %v1300
        %v1302 = vpop.xlane.xlu0 %1301
        %v1303 = vsel %vm1164, %v1258, 0.0
        %1304 = vadd.xlane.f32.xlu0 %v1303
        %v1305 = vpop.xlane.xlu0 %1304
        %v1306 = vsel %vm1164, %v1260, 0.0
        %1307 = vadd.xlane.f32.xlu0 %v1306
        %v1308 = vpop.xlane.xlu0 %1307
        %v1309 = vrcp.pop %v1263
        %v1310 = vrcp.pop %v1266
        %v1311 = vrcp.pop %v1269
        %v1312 = vrcp.pop %v1272
        %v1313 = vrcp.pop %v1275
        %v1314 = vrcp.pop %v1278
        %v1315 = vrcp.pop %v1281
        %v1316 = vrcp.pop %v1284
        %v1317 = vrcp.pop %v1287
        %v1318 = vrcp.pop %v1290
        %v1319 = vrcp.pop %v1293
        %v1320 = vrcp.pop %v1296
        %v1321 = vrcp.pop %v1299
        %v1322 = vrcp.pop %v1302
        %v1323 = vrcp.pop %v1305
        %v1324 = vrcp.pop %v1308
        %v1325 = vmul.f32 %v1230, %v1309
        %v1326 = vmul.f32 %v1232, %v1310
        %v1327 = vmul.f32 %v1234, %v1311
        %v1328 = vmul.f32 %v1236, %v1312
        %v1329 = vmul.f32 %v1238, %v1313
        %v1330 = vmul.f32 %v1240, %v1314
        %v1331 = vmul.f32 %v1242, %v1315
        %v1332 = vmul.f32 %v1244, %v1316
        %v1333 = vmul.f32 %v1246, %v1317
        %v1334 = vmul.f32 %v1248, %v1318
        %v1335 = vmul.f32 %v1250, %v1319
        %v1336 = vmul.f32 %v1252, %v1320
        %v1337 = vmul.f32 %v1254, %v1321
        %v1338 = vmul.f32 %v1256, %v1322
        %v1339 = vmul.f32 %v1258, %v1323
        %v1340 = vmul.f32 %v1260, %v1324
        %v1342 = vsel %vm1164, %v1325, 0
        %v1345 = vsel %vm1164, %v1326, 0
        %1347 = vmatprep.subr.mxu0 0.0
        %1348 = vmatpush1.msra.mxu0 %v339
        %1349 = vmatprep.subr.mxu0 0.0
        %1350 = vmatpush1.msra.mxu0 %v345
        %1351 = vmatprep.subr.mxu0 0.0
        %1352 = vmatpush1.msra.mxu0 0.0
        %1353 = vmatprep.subr.mxu0 0.0
        %1354 = vmatpush1.msra.mxu0 0.0
        %1355 = vmatprep.subr.mxu0 0.0
        %1356 = vmatpush1.msra.mxu0 0.0
        %1357 = vmatprep.subr.mxu0 0.0
        %1358 = vmatpush1.msra.mxu0 0.0
        %1359 = vmatprep.subr.mxu0 0.0
        %1360 = vmatpush1.msra.mxu0 0.0
        %1361 = vmatprep.subr.mxu0 0.0
        %1362 = vmatpush1.msra.mxu0 0.0
        %1363 = vmatprep.subr.mxu0 0.0
        %1364 = vmatpush1.msra.mxu0 0.0
        %1365 = vmatprep.subr.mxu0 0.0
        %1366 = vmatpush1.msra.mxu0 0.0
        %1367 = vmatprep.subr.mxu0 0.0
        %1368 = vmatpush1.msra.mxu0 0.0
        %1369 = vmatprep.subr.mxu0 0.0
        %1370 = vmatpush1.msra.mxu0 0.0
        %1371 = vmatprep.subr.mxu0 0.0
        %1372 = vmatpush1.msra.mxu0 0.0
        %1373 = vmatprep.subr.mxu0 0.0
        %1374 = vmatpush1.msra.mxu0 0.0
        %1375 = vmatprep.subr.mxu0 0.0
        %1376 = vmatpush1.msra.mxu0 0.0
        %1377 = vmatprep.subr.mxu0 0.0
        %1378 = vmatpush1.msra.mxu0 0.0
        %1379 = vmatprep.subr.mxu0 0.0
        %1380 = vmatpush1.msra.mxu0 0.0
        %1381 = vmatprep.subr.mxu0 0.0
        %1382 = vmatpush1.msra.mxu0 0.0
        %1383 = vmatprep.subr.mxu0 0.0
        %1384 = vmatpush1.msra.mxu0 0.0
        %1385 = vmatprep.subr.mxu0 0.0
        %1386 = vmatpush1.msra.mxu0 0.0
        %1387 = vmatprep.subr.mxu0 0.0
        %1388 = vmatpush1.msra.mxu0 0.0
        %1389 = vmatprep.subr.mxu0 0.0
        %1390 = vmatpush1.msra.mxu0 0.0
        %1391 = vmatprep.subr.mxu0 0.0
        %1392 = vmatpush1.msra.mxu0 0.0
        %1393 = vmatprep.subr.mxu0 0.0
        %1394 = vmatpush1.msra.mxu0 0.0
        %1395 = vmatprep.subr.mxu0 0.0
        %1396 = vmatpush1.msra.mxu0 0.0
        %1397 = vmatprep.subr.mxu0 0.0
        %1398 = vmatpush1.msra.mxu0 0.0
        %1399 = vmatprep.subr.mxu0 0.0
        %1400 = vmatpush1.msra.mxu0 0.0
        %1401 = vmatprep.subr.mxu0 0.0
        %1402 = vmatpush1.msra.mxu0 0.0
        %1403 = vmatprep.subr.mxu0 0.0
        %1404 = vmatpush1.msra.mxu0 0.0
        %1405 = vmatprep.subr.mxu0 0.0
        %1406 = vmatpush1.msra.mxu0 0.0
        %1407 = vmatprep.subr.mxu0 0.0
        %1408 = vmatpush1.msra.mxu0 0.0
        %1409 = vmatprep.subr.mxu0 0.0
        %1410 = vmatpush1.msra.mxu0 0.0
        %1411 = vmatprep.mubr.f32.mxu0 0.0
        %1412 = vmatmul.mubr.f32.gmra.mrb[0].mxu0 %v1342
        %v1413 = vpop.f32.mrb[0].mxu0
        %v1414 = vadd.f32 0.0, %v1413
        %v1415 = vpop.f32.mrb[0].mxu0
        %1416 = vmatprep.mubr.f32.mxu0 0.0
        %1417 = vmatmul.mubr.f32.gmra.mrb[0].mxu0 %v1345
        %v1418 = vpop.f32.mrb[0].mxu0
        %v1419 = vadd.f32 0.0, %v1418
        %v1420 = vpop.f32.mrb[0].mxu0
        %1421 = vdwg.mxu0
        %v1423 = vsel %vm1164, %v1327, 0
        %v1426 = vsel %vm1164, %v1328, 0
        %1428 = vmatprep.subr.mxu0 0.0
        %1429 = vmatpush1.msra.mxu0 %v410
        %1430 = vmatprep.subr.mxu0 0.0
        %1431 = vmatpush1.msra.mxu0 %v412
        %1432 = vmatprep.subr.mxu0 0.0
        %1433 = vmatpush1.msra.mxu0 0.0
        %1434 = vmatprep.subr.mxu0 0.0
        %1435 = vmatpush1.msra.mxu0 0.0
        %1436 = vmatprep.subr.mxu0 0.0
        %1437 = vmatpush1.msra.mxu0 0.0
        %1438 = vmatprep.subr.mxu0 0.0
        %1439 = vmatpush1.msra.mxu0 0.0
        %1440 = vmatprep.subr.mxu0 0.0
        %1441 = vmatpush1.msra.mxu0 0.0
        %1442 = vmatprep.subr.mxu0 0.0
        %1443 = vmatpush1.msra.mxu0 0.0
        %1444 = vmatprep.subr.mxu0 0.0
        %1445 = vmatpush1.msra.mxu0 0.0
        %1446 = vmatprep.subr.mxu0 0.0
        %1447 = vmatpush1.msra.mxu0 0.0
        %1448 = vmatprep.subr.mxu0 0.0
        %1449 = vmatpush1.msra.mxu0 0.0
        %1450 = vmatprep.subr.mxu0 0.0
        %1451 = vmatpush1.msra.mxu0 0.0
        %1452 = vmatprep.subr.mxu0 0.0
        %1453 = vmatpush1.msra.mxu0 0.0
        %1454 = vmatprep.subr.mxu0 0.0
        %1455 = vmatpush1.msra.mxu0 0.0
        %1456 = vmatprep.subr.mxu0 0.0
        %1457 = vmatpush1.msra.mxu0 0.0
        %1458 = vmatprep.subr.mxu0 0.0
        %1459 = vmatpush1.msra.mxu0 0.0
        %1460 = vmatprep.subr.mxu0 0.0
        %1461 = vmatpush1.msra.mxu0 0.0
        %1462 = vmatprep.subr.mxu0 0.0
        %1463 = vmatpush1.msra.mxu0 0.0
        %1464 = vmatprep.subr.mxu0 0.0
        %1465 = vmatpush1.msra.mxu0 0.0
        %1466 = vmatprep.subr.mxu0 0.0
        %1467 = vmatpush1.msra.mxu0 0.0
        %1468 = vmatprep.subr.mxu0 0.0
        %1469 = vmatpush1.msra.mxu0 0.0
        %1470 = vmatprep.subr.mxu0 0.0
        %1471 = vmatpush1.msra.mxu0 0.0
        %1472 = vmatprep.subr.mxu0 0.0
        %1473 = vmatpush1.msra.mxu0 0.0
        %1474 = vmatprep.subr.mxu0 0.0
        %1475 = vmatpush1.msra.mxu0 0.0
        %1476 = vmatprep.subr.mxu0 0.0
        %1477 = vmatpush1.msra.mxu0 0.0
        %1478 = vmatprep.subr.mxu0 0.0
        %1479 = vmatpush1.msra.mxu0 0.0
        %1480 = vmatprep.subr.mxu0 0.0
        %1481 = vmatpush1.msra.mxu0 0.0
        %1482 = vmatprep.subr.mxu0 0.0
        %1483 = vmatpush1.msra.mxu0 0.0
        %1484 = vmatprep.subr.mxu0 0.0
        %1485 = vmatpush1.msra.mxu0 0.0
        %1486 = vmatprep.subr.mxu0 0.0
        %1487 = vmatpush1.msra.mxu0 0.0
        %1488 = vmatprep.subr.mxu0 0.0
        %1489 = vmatpush1.msra.mxu0 0.0
        %1490 = vmatprep.subr.mxu0 0.0
        %1491 = vmatpush1.msra.mxu0 0.0
        %1492 = vmatprep.mubr.f32.mxu0 0.0
        %1493 = vmatmul.mubr.f32.gmra.mrb[0].mxu0 %v1423
        %v1494 = vpop.f32.mrb[0].mxu0
        %v1495 = vadd.f32 0.0, %v1494
        %v1496 = vpop.f32.mrb[0].mxu0
        %1497 = vmatprep.mubr.f32.mxu0 0.0
        %1498 = vmatmul.mubr.f32.gmra.mrb[0].mxu0 %v1426
        %v1499 = vpop.f32.mrb[0].mxu0
        %v1500 = vadd.f32 0.0, %v1499
        %v1501 = vpop.f32.mrb[0].mxu0
        %1502 = vdwg.mxu0
        %v1504 = vsel %vm1164, %v1329, 0
        %v1507 = vsel %vm1164, %v1330, 0
        %1509 = vmatprep.subr.mxu0 0.0
        %1510 = vmatpush1.msra.mxu0 %v416
        %1511 = vmatprep.subr.mxu0 0.0
        %1512 = vmatpush1.msra.mxu0 %v418
        %1513 = vmatprep.subr.mxu0 0.0
        %1514 = vmatpush1.msra.mxu0 0.0
        %1515 = vmatprep.subr.mxu0 0.0
        %1516 = vmatpush1.msra.mxu0 0.0
        %1517 = vmatprep.subr.mxu0 0.0
        %1518 = vmatpush1.msra.mxu0 0.0
        %1519 = vmatprep.subr.mxu0 0.0
        %1520 = vmatpush1.msra.mxu0 0.0
        %1521 = vmatprep.subr.mxu0 0.0
        %1522 = vmatpush1.msra.mxu0 0.0
        %1523 = vmatprep.subr.mxu0 0.0
        %1524 = vmatpush1.msra.mxu0 0.0
        %1525 = vmatprep.subr.mxu0 0.0
        %1526 = vmatpush1.msra.mxu0 0.0
        %1527 = vmatprep.subr.mxu0 0.0
        %1528 = vmatpush1.msra.mxu0 0.0
        %1529 = vmatprep.subr.mxu0 0.0
        %1530 = vmatpush1.msra.mxu0 0.0
        %1531 = vmatprep.subr.mxu0 0.0
        %1532 = vmatpush1.msra.mxu0 0.0
        %1533 = vmatprep.subr.mxu0 0.0
        %1534 = vmatpush1.msra.mxu0 0.0
        %1535 = vmatprep.subr.mxu0 0.0
        %1536 = vmatpush1.msra.mxu0 0.0
        %1537 = vmatprep.subr.mxu0 0.0
        %1538 = vmatpush1.msra.mxu0 0.0
        %1539 = vmatprep.subr.mxu0 0.0
        %1540 = vmatpush1.msra.mxu0 0.0
        %1541 = vmatprep.subr.mxu0 0.0
        %1542 = vmatpush1.msra.mxu0 0.0
        %1543 = vmatprep.subr.mxu0 0.0
        %1544 = vmatpush1.msra.mxu0 0.0
        %1545 = vmatprep.subr.mxu0 0.0
        %1546 = vmatpush1.msra.mxu0 0.0
        %1547 = vmatprep.subr.mxu0 0.0
        %1548 = vmatpush1.msra.mxu0 0.0
        %1549 = vmatprep.subr.mxu0 0.0
        %1550 = vmatpush1.msra.mxu0 0.0
        %1551 = vmatprep.subr.mxu0 0.0
        %1552 = vmatpush1.msra.mxu0 0.0
        %1553 = vmatprep.subr.mxu0 0.0
        %1554 = vmatpush1.msra.mxu0 0.0
        %1555 = vmatprep.subr.mxu0 0.0
        %1556 = vmatpush1.msra.mxu0 0.0
        %1557 = vmatprep.subr.mxu0 0.0
        %1558 = vmatpush1.msra.mxu0 0.0
        %1559 = vmatprep.subr.mxu0 0.0
        %1560 = vmatpush1.msra.mxu0 0.0
        %1561 = vmatprep.subr.mxu0 0.0
        %1562 = vmatpush1.msra.mxu0 0.0
        %1563 = vmatprep.subr.mxu0 0.0
        %1564 = vmatpush1.msra.mxu0 0.0
        %1565 = vmatprep.subr.mxu0 0.0
        %1566 = vmatpush1.msra.mxu0 0.0
        %1567 = vmatprep.subr.mxu0 0.0
        %1568 = vmatpush1.msra.mxu0 0.0
        %1569 = vmatprep.subr.mxu0 0.0
        %1570 = vmatpush1.msra.mxu0 0.0
        %1571 = vmatprep.subr.mxu0 0.0
        %1572 = vmatpush1.msra.mxu0 0.0
        %1573 = vmatprep.mubr.f32.mxu0 0.0
        %1574 = vmatmul.mubr.f32.gmra.mrb[0].mxu0 %v1504
        %v1575 = vpop.f32.mrb[0].mxu0
        %v1576 = vadd.f32 0.0, %v1575
        %v1577 = vpop.f32.mrb[0].mxu0
        %1578 = vmatprep.mubr.f32.mxu0 0.0
        %1579 = vmatmul.mubr.f32.gmra.mrb[0].mxu0 %v1507
        %v1580 = vpop.f32.mrb[0].mxu0
        %v1581 = vadd.f32 0.0, %v1580
        %v1582 = vpop.f32.mrb[0].mxu0
        %1583 = vdwg.mxu0
        %v1585 = vsel %vm1164, %v1331, 0
        %v1588 = vsel %vm1164, %v1332, 0
        %1590 = vmatprep.subr.mxu0 0.0
        %1591 = vmatpush1.msra.mxu0 %v422
        %1592 = vmatprep.subr.mxu0 0.0
        %1593 = vmatpush1.msra.mxu0 %v424
        %1594 = vmatprep.subr.mxu0 0.0
        %1595 = vmatpush1.msra.mxu0 0.0
        %1596 = vmatprep.subr.mxu0 0.0
        %1597 = vmatpush1.msra.mxu0 0.0
        %1598 = vmatprep.subr.mxu0 0.0
        %1599 = vmatpush1.msra.mxu0 0.0
        %1600 = vmatprep.subr.mxu0 0.0
        %1601 = vmatpush1.msra.mxu0 0.0
        %1602 = vmatprep.subr.mxu0 0.0
        %1603 = vmatpush1.msra.mxu0 0.0
        %1604 = vmatprep.subr.mxu0 0.0
        %1605 = vmatpush1.msra.mxu0 0.0
        %1606 = vmatprep.subr.mxu0 0.0
        %1607 = vmatpush1.msra.mxu0 0.0
        %1608 = vmatprep.subr.mxu0 0.0
        %1609 = vmatpush1.msra.mxu0 0.0
        %1610 = vmatprep.subr.mxu0 0.0
        %1611 = vmatpush1.msra.mxu0 0.0
        %1612 = vmatprep.subr.mxu0 0.0
        %1613 = vmatpush1.msra.mxu0 0.0
        %1614 = vmatprep.subr.mxu0 0.0
        %1615 = vmatpush1.msra.mxu0 0.0
        %1616 = vmatprep.subr.mxu0 0.0
        %1617 = vmatpush1.msra.mxu0 0.0
        %1618 = vmatprep.subr.mxu0 0.0
        %1619 = vmatpush1.msra.mxu0 0.0
        %1620 = vmatprep.subr.mxu0 0.0
        %1621 = vmatpush1.msra.mxu0 0.0
        %1622 = vmatprep.subr.mxu0 0.0
        %1623 = vmatpush1.msra.mxu0 0.0
        %1624 = vmatprep.subr.mxu0 0.0
        %1625 = vmatpush1.msra.mxu0 0.0
        %1626 = vmatprep.subr.mxu0 0.0
        %1627 = vmatpush1.msra.mxu0 0.0
        %1628 = vmatprep.subr.mxu0 0.0
        %1629 = vmatpush1.msra.mxu0 0.0
        %1630 = vmatprep.subr.mxu0 0.0
        %1631 = vmatpush1.msra.mxu0 0.0
        %1632 = vmatprep.subr.mxu0 0.0
        %1633 = vmatpush1.msra.mxu0 0.0
        %1634 = vmatprep.subr.mxu0 0.0
        %1635 = vmatpush1.msra.mxu0 0.0
        %1636 = vmatprep.subr.mxu0 0.0
        %1637 = vmatpush1.msra.mxu0 0.0
        %1638 = vmatprep.subr.mxu0 0.0
        %1639 = vmatpush1.msra.mxu0 0.0
        %1640 = vmatprep.subr.mxu0 0.0
        %1641 = vmatpush1.msra.mxu0 0.0
        %1642 = vmatprep.subr.mxu0 0.0
        %1643 = vmatpush1.msra.mxu0 0.0
        %1644 = vmatprep.subr.mxu0 0.0
        %1645 = vmatpush1.msra.mxu0 0.0
        %1646 = vmatprep.subr.mxu0 0.0
        %1647 = vmatpush1.msra.mxu0 0.0
        %1648 = vmatprep.subr.mxu0 0.0
        %1649 = vmatpush1.msra.mxu0 0.0
        %1650 = vmatprep.subr.mxu0 0.0
        %1651 = vmatpush1.msra.mxu0 0.0
        %1652 = vmatprep.subr.mxu0 0.0
        %1653 = vmatpush1.msra.mxu0 0.0
        %1654 = vmatprep.mubr.f32.mxu0 0.0
        %1655 = vmatmul.mubr.f32.gmra.mrb[0].mxu0 %v1585
        %v1656 = vpop.f32.mrb[0].mxu0
        %v1657 = vadd.f32 0.0, %v1656
        %v1658 = vpop.f32.mrb[0].mxu0
        %1659 = vmatprep.mubr.f32.mxu0 0.0
        %1660 = vmatmul.mubr.f32.gmra.mrb[0].mxu0 %v1588
        %v1661 = vpop.f32.mrb[0].mxu0
        %v1662 = vadd.f32 0.0, %v1661
        %v1663 = vpop.f32.mrb[0].mxu0
        %1664 = vdwg.mxu0
        %v1666 = vsel %vm1164, %v1333, 0
        %v1669 = vsel %vm1164, %v1334, 0
        %1671 = vmatprep.subr.mxu0 0.0
        %1672 = vmatpush1.msra.mxu0 %v428
        %1673 = vmatprep.subr.mxu0 0.0
        %1674 = vmatpush1.msra.mxu0 %v430
        %1675 = vmatprep.subr.mxu0 0.0
        %1676 = vmatpush1.msra.mxu0 0.0
        %1677 = vmatprep.subr.mxu0 0.0
        %1678 = vmatpush1.msra.mxu0 0.0
        %1679 = vmatprep.subr.mxu0 0.0
        %1680 = vmatpush1.msra.mxu0 0.0
        %1681 = vmatprep.subr.mxu0 0.0
        %1682 = vmatpush1.msra.mxu0 0.0
        %1683 = vmatprep.subr.mxu0 0.0
        %1684 = vmatpush1.msra.mxu0 0.0
        %1685 = vmatprep.subr.mxu0 0.0
        %1686 = vmatpush1.msra.mxu0 0.0
        %1687 = vmatprep.subr.mxu0 0.0
        %1688 = vmatpush1.msra.mxu0 0.0
        %1689 = vmatprep.subr.mxu0 0.0
        %1690 = vmatpush1.msra.mxu0 0.0
        %1691 = vmatprep.subr.mxu0 0.0
        %1692 = vmatpush1.msra.mxu0 0.0
        %1693 = vmatprep.subr.mxu0 0.0
        %1694 = vmatpush1.msra.mxu0 0.0
        %1695 = vmatprep.subr.mxu0 0.0
        %1696 = vmatpush1.msra.mxu0 0.0
        %1697 = vmatprep.subr.mxu0 0.0
        %1698 = vmatpush1.msra.mxu0 0.0
        %1699 = vmatprep.subr.mxu0 0.0
        %1700 = vmatpush1.msra.mxu0 0.0
        %1701 = vmatprep.subr.mxu0 0.0
        %1702 = vmatpush1.msra.mxu0 0.0
        %1703 = vmatprep.subr.mxu0 0.0
        %1704 = vmatpush1.msra.mxu0 0.0
        %1705 = vmatprep.subr.mxu0 0.0
        %1706 = vmatpush1.msra.mxu0 0.0
        %1707 = vmatprep.subr.mxu0 0.0
        %1708 = vmatpush1.msra.mxu0 0.0
        %1709 = vmatprep.subr.mxu0 0.0
        %1710 = vmatpush1.msra.mxu0 0.0
        %1711 = vmatprep.subr.mxu0 0.0
        %1712 = vmatpush1.msra.mxu0 0.0
        %1713 = vmatprep.subr.mxu0 0.0
        %1714 = vmatpush1.msra.mxu0 0.0
        %1715 = vmatprep.subr.mxu0 0.0
        %1716 = vmatpush1.msra.mxu0 0.0
        %1717 = vmatprep.subr.mxu0 0.0
        %1718 = vmatpush1.msra.mxu0 0.0
        %1719 = vmatprep.subr.mxu0 0.0
        %1720 = vmatpush1.msra.mxu0 0.0
        %1721 = vmatprep.subr.mxu0 0.0
        %1722 = vmatpush1.msra.mxu0 0.0
        %1723 = vmatprep.subr.mxu0 0.0
        %1724 = vmatpush1.msra.mxu0 0.0
        %1725 = vmatprep.subr.mxu0 0.0
        %1726 = vmatpush1.msra.mxu0 0.0
        %1727 = vmatprep.subr.mxu0 0.0
        %1728 = vmatpush1.msra.mxu0 0.0
        %1729 = vmatprep.subr.mxu0 0.0
        %1730 = vmatpush1.msra.mxu0 0.0
        %1731 = vmatprep.subr.mxu0 0.0
        %1732 = vmatpush1.msra.mxu0 0.0
        %1733 = vmatprep.subr.mxu0 0.0
        %1734 = vmatpush1.msra.mxu0 0.0
        %1735 = vmatprep.mubr.f32.mxu0 0.0
        %1736 = vmatmul.mubr.f32.gmra.mrb[0].mxu0 %v1666
        %v1737 = vpop.f32.mrb[0].mxu0
        %v1738 = vadd.f32 0.0, %v1737
        %v1739 = vpop.f32.mrb[0].mxu0
        %1740 = vmatprep.mubr.f32.mxu0 0.0
        %1741 = vmatmul.mubr.f32.gmra.mrb[0].mxu0 %v1669
        %v1742 = vpop.f32.mrb[0].mxu0
        %v1743 = vadd.f32 0.0, %v1742
        %v1744 = vpop.f32.mrb[0].mxu0
        %1745 = vdwg.mxu0
        %v1747 = vsel %vm1164, %v1335, 0
        %v1750 = vsel %vm1164, %v1336, 0
        %1752 = vmatprep.subr.mxu0 0.0
        %1753 = vmatpush1.msra.mxu0 %v434
        %1754 = vmatprep.subr.mxu0 0.0
        %1755 = vmatpush1.msra.mxu0 %v436
        %1756 = vmatprep.subr.mxu0 0.0
        %1757 = vmatpush1.msra.mxu0 0.0
        %1758 = vmatprep.subr.mxu0 0.0
        %1759 = vmatpush1.msra.mxu0 0.0
        %1760 = vmatprep.subr.mxu0 0.0
        %1761 = vmatpush1.msra.mxu0 0.0
        %1762 = vmatprep.subr.mxu0 0.0
        %1763 = vmatpush1.msra.mxu0 0.0
        %1764 = vmatprep.subr.mxu0 0.0
        %1765 = vmatpush1.msra.mxu0 0.0
        %1766 = vmatprep.subr.mxu0 0.0
        %1767 = vmatpush1.msra.mxu0 0.0
        %1768 = vmatprep.subr.mxu0 0.0
        %1769 = vmatpush1.msra.mxu0 0.0
        %1770 = vmatprep.subr.mxu0 0.0
        %1771 = vmatpush1.msra.mxu0 0.0
        %1772 = vmatprep.subr.mxu0 0.0
        %1773 = vmatpush1.msra.mxu0 0.0
        %1774 = vmatprep.subr.mxu0 0.0
        %1775 = vmatpush1.msra.mxu0 0.0
        %1776 = vmatprep.subr.mxu0 0.0
        %1777 = vmatpush1.msra.mxu0 0.0
        %1778 = vmatprep.subr.mxu0 0.0
        %1779 = vmatpush1.msra.mxu0 0.0
        %1780 = vmatprep.subr.mxu0 0.0
        %1781 = vmatpush1.msra.mxu0 0.0
        %1782 = vmatprep.subr.mxu0 0.0
        %1783 = vmatpush1.msra.mxu0 0.0
        %1784 = vmatprep.subr.mxu0 0.0
        %1785 = vmatpush1.msra.mxu0 0.0
        %1786 = vmatprep.subr.mxu0 0.0
        %1787 = vmatpush1.msra.mxu0 0.0
        %1788 = vmatprep.subr.mxu0 0.0
        %1789 = vmatpush1.msra.mxu0 0.0
        %1790 = vmatprep.subr.mxu0 0.0
        %1791 = vmatpush1.msra.mxu0 0.0
        %1792 = vmatprep.subr.mxu0 0.0
        %1793 = vmatpush1.msra.mxu0 0.0
        %1794 = vmatprep.subr.mxu0 0.0
        %1795 = vmatpush1.msra.mxu0 0.0
        %1796 = vmatprep.subr.mxu0 0.0
        %1797 = vmatpush1.msra.mxu0 0.0
        %1798 = vmatprep.subr.mxu0 0.0
        %1799 = vmatpush1.msra.mxu0 0.0
        %1800 = vmatprep.subr.mxu0 0.0
        %1801 = vmatpush1.msra.mxu0 0.0
        %1802 = vmatprep.subr.mxu0 0.0
        %1803 = vmatpush1.msra.mxu0 0.0
        %1804 = vmatprep.subr.mxu0 0.0
        %1805 = vmatpush1.msra.mxu0 0.0
        %1806 = vmatprep.subr.mxu0 0.0
        %1807 = vmatpush1.msra.mxu0 0.0
        %1808 = vmatprep.subr.mxu0 0.0
        %1809 = vmatpush1.msra.mxu0 0.0
        %1810 = vmatprep.subr.mxu0 0.0
        %1811 = vmatpush1.msra.mxu0 0.0
        %1812 = vmatprep.subr.mxu0 0.0
        %1813 = vmatpush1.msra.mxu0 0.0
        %1814 = vmatprep.subr.mxu0 0.0
        %1815 = vmatpush1.msra.mxu0 0.0
        %1816 = vmatprep.mubr.f32.mxu0 0.0
        %1817 = vmatmul.mubr.f32.gmra.mrb[0].mxu0 %v1747
        %v1818 = vpop.f32.mrb[0].mxu0
        %v1819 = vadd.f32 0.0, %v1818
        %v1820 = vpop.f32.mrb[0].mxu0
        %1821 = vmatprep.mubr.f32.mxu0 0.0
        %1822 = vmatmul.mubr.f32.gmra.mrb[0].mxu0 %v1750
        %v1823 = vpop.f32.mrb[0].mxu0
        %v1824 = vadd.f32 0.0, %v1823
        %v1825 = vpop.f32.mrb[0].mxu0
        %1826 = vdwg.mxu0
        %v1828 = vsel %vm1164, %v1337, 0
        %v1831 = vsel %vm1164, %v1338, 0
        %1833 = vmatprep.subr.mxu0 0.0
        %1834 = vmatpush1.msra.mxu0 %v440
        %1835 = vmatprep.subr.mxu0 0.0
        %1836 = vmatpush1.msra.mxu0 %v442
        %1837 = vmatprep.subr.mxu0 0.0
        %1838 = vmatpush1.msra.mxu0 0.0
        %1839 = vmatprep.subr.mxu0 0.0
        %1840 = vmatpush1.msra.mxu0 0.0
        %1841 = vmatprep.subr.mxu0 0.0
        %1842 = vmatpush1.msra.mxu0 0.0
        %1843 = vmatprep.subr.mxu0 0.0
        %1844 = vmatpush1.msra.mxu0 0.0
        %1845 = vmatprep.subr.mxu0 0.0
        %1846 = vmatpush1.msra.mxu0 0.0
        %1847 = vmatprep.subr.mxu0 0.0
        %1848 = vmatpush1.msra.mxu0 0.0
        %1849 = vmatprep.subr.mxu0 0.0
        %1850 = vmatpush1.msra.mxu0 0.0
        %1851 = vmatprep.subr.mxu0 0.0
        %1852 = vmatpush1.msra.mxu0 0.0
        %1853 = vmatprep.subr.mxu0 0.0
        %1854 = vmatpush1.msra.mxu0 0.0
        %1855 = vmatprep.subr.mxu0 0.0
        %1856 = vmatpush1.msra.mxu0 0.0
        %1857 = vmatprep.subr.mxu0 0.0
        %1858 = vmatpush1.msra.mxu0 0.0
        %1859 = vmatprep.subr.mxu0 0.0
        %1860 = vmatpush1.msra.mxu0 0.0
        %1861 = vmatprep.subr.mxu0 0.0
        %1862 = vmatpush1.msra.mxu0 0.0
        %1863 = vmatprep.subr.mxu0 0.0
        %1864 = vmatpush1.msra.mxu0 0.0
        %1865 = vmatprep.subr.mxu0 0.0
        %1866 = vmatpush1.msra.mxu0 0.0
        %1867 = vmatprep.subr.mxu0 0.0
        %1868 = vmatpush1.msra.mxu0 0.0
        %1869 = vmatprep.subr.mxu0 0.0
        %1870 = vmatpush1.msra.mxu0 0.0
        %1871 = vmatprep.subr.mxu0 0.0
        %1872 = vmatpush1.msra.mxu0 0.0
        %1873 = vmatprep.subr.mxu0 0.0
        %1874 = vmatpush1.msra.mxu0 0.0
        %1875 = vmatprep.subr.mxu0 0.0
        %1876 = vmatpush1.msra.mxu0 0.0
        %1877 = vmatprep.subr.mxu0 0.0
        %1878 = vmatpush1.msra.mxu0 0.0
        %1879 = vmatprep.subr.mxu0 0.0
        %1880 = vmatpush1.msra.mxu0 0.0
        %1881 = vmatprep.subr.mxu0 0.0
        %1882 = vmatpush1.msra.mxu0 0.0
        %1883 = vmatprep.subr.mxu0 0.0
        %1884 = vmatpush1.msra.mxu0 0.0
        %1885 = vmatprep.subr.mxu0 0.0
        %1886 = vmatpush1.msra.mxu0 0.0
        %1887 = vmatprep.subr.mxu0 0.0
        %1888 = vmatpush1.msra.mxu0 0.0
        %1889 = vmatprep.subr.mxu0 0.0
        %1890 = vmatpush1.msra.mxu0 0.0
        %1891 = vmatprep.subr.mxu0 0.0
        %1892 = vmatpush1.msra.mxu0 0.0
        %1893 = vmatprep.subr.mxu0 0.0
        %1894 = vmatpush1.msra.mxu0 0.0
        %1895 = vmatprep.subr.mxu0 0.0
        %1896 = vmatpush1.msra.mxu0 0.0
        %1897 = vmatprep.mubr.f32.mxu0 0.0
        %1898 = vmatmul.mubr.f32.gmra.mrb[0].mxu0 %v1828
        %v1899 = vpop.f32.mrb[0].mxu0
        %v1900 = vadd.f32 0.0, %v1899
        %v1901 = vpop.f32.mrb[0].mxu0
        %1902 = vmatprep.mubr.f32.mxu0 0.0
        %1903 = vmatmul.mubr.f32.gmra.mrb[0].mxu0 %v1831
        %v1904 = vpop.f32.mrb[0].mxu0
        %v1905 = vadd.f32 0.0, %v1904
        %v1906 = vpop.f32.mrb[0].mxu0
        %1907 = vdwg.mxu0
        %v1909 = vsel %vm1164, %v1339, 0
        %v1912 = vsel %vm1164, %v1340, 0
        %1914 = vmatprep.subr.mxu0 0.0
        %1915 = vmatpush1.msra.mxu0 %v446
        %1916 = vmatprep.subr.mxu0 0.0
        %1917 = vmatpush1.msra.mxu0 %v448
        %1918 = vmatprep.subr.mxu0 0.0
        %1919 = vmatpush1.msra.mxu0 0.0
        %1920 = vmatprep.subr.mxu0 0.0
        %1921 = vmatpush1.msra.mxu0 0.0
        %1922 = vmatprep.subr.mxu0 0.0
        %1923 = vmatpush1.msra.mxu0 0.0
        %1924 = vmatprep.subr.mxu0 0.0
        %1925 = vmatpush1.msra.mxu0 0.0
        %1926 = vmatprep.subr.mxu0 0.0
        %1927 = vmatpush1.msra.mxu0 0.0
        %1928 = vmatprep.subr.mxu0 0.0
        %1929 = vmatpush1.msra.mxu0 0.0
        %1930 = vmatprep.subr.mxu0 0.0
        %1931 = vmatpush1.msra.mxu0 0.0
        %1932 = vmatprep.subr.mxu0 0.0
        %1933 = vmatpush1.msra.mxu0 0.0
        %1934 = vmatprep.subr.mxu0 0.0
        %1935 = vmatpush1.msra.mxu0 0.0
        %1936 = vmatprep.subr.mxu0 0.0
        %1937 = vmatpush1.msra.mxu0 0.0
        %1938 = vmatprep.subr.mxu0 0.0
        %1939 = vmatpush1.msra.mxu0 0.0
        %1940 = vmatprep.subr.mxu0 0.0
        %1941 = vmatpush1.msra.mxu0 0.0
        %1942 = vmatprep.subr.mxu0 0.0
        %1943 = vmatpush1.msra.mxu0 0.0
        %1944 = vmatprep.subr.mxu0 0.0
        %1945 = vmatpush1.msra.mxu0 0.0
        %1946 = vmatprep.subr.mxu0 0.0
        %1947 = vmatpush1.msra.mxu0 0.0
        %1948 = vmatprep.subr.mxu0 0.0
        %1949 = vmatpush1.msra.mxu0 0.0
        %1950 = vmatprep.subr.mxu0 0.0
        %1951 = vmatpush1.msra.mxu0 0.0
        %1952 = vmatprep.subr.mxu0 0.0
        %1953 = vmatpush1.msra.mxu0 0.0
        %1954 = vmatprep.subr.mxu0 0.0
        %1955 = vmatpush1.msra.mxu0 0.0
        %1956 = vmatprep.subr.mxu0 0.0
        %1957 = vmatpush1.msra.mxu0 0.0
        %1958 = vmatprep.subr.mxu0 0.0
        %1959 = vmatpush1.msra.mxu0 0.0
        %1960 = vmatprep.subr.mxu0 0.0
        %1961 = vmatpush1.msra.mxu0 0.0
        %1962 = vmatprep.subr.mxu0 0.0
        %1963 = vmatpush1.msra.mxu0 0.0
        %1964 = vmatprep.subr.mxu0 0.0
        %1965 = vmatpush1.msra.mxu0 0.0
        %1966 = vmatprep.subr.mxu0 0.0
        %1967 = vmatpush1.msra.mxu0 0.0
        %1968 = vmatprep.subr.mxu0 0.0
        %1969 = vmatpush1.msra.mxu0 0.0
        %1970 = vmatprep.subr.mxu0 0.0
        %1971 = vmatpush1.msra.mxu0 0.0
        %1972 = vmatprep.subr.mxu0 0.0
        %1973 = vmatpush1.msra.mxu0 0.0
        %1974 = vmatprep.subr.mxu0 0.0
        %1975 = vmatpush1.msra.mxu0 0.0
        %1976 = vmatprep.subr.mxu0 0.0
        %1977 = vmatpush1.msra.mxu0 0.0
        %1978 = vmatprep.mubr.f32.mxu0 0.0
        %1979 = vmatmul.mubr.f32.gmra.mrb[0].mxu0 %v1909
        %v1980 = vpop.f32.mrb[0].mxu0
        %v1981 = vadd.f32 0.0, %v1980
        %v1982 = vpop.f32.mrb[0].mxu0
        %1983 = vmatprep.mubr.f32.mxu0 0.0
        %1984 = vmatmul.mubr.f32.gmra.mrb[0].mxu0 %v1912
        %v1985 = vpop.f32.mrb[0].mxu0
        %v1986 = vadd.f32 0.0, %v1985
        %v1987 = vpop.f32.mrb[0].mxu0
        %1988 = vdwg.mxu0
        %1991 = vrot.lane.b32.xlu0 %v1495, 8
        %v1992 = vpop.permute.xlu0 %1991
        %1993 = vrot.lane.b32.xlu0 %v1500, 8
        %v1994 = vpop.permute.xlu0 %1993
        %1999 = vrot.lane.b32.xlu0 %v1576, 16
        %v2000 = vpop.permute.xlu0 %1999
        %2001 = vrot.lane.b32.xlu0 %v1581, 16
        %v2002 = vpop.permute.xlu0 %2001
        %2007 = vrot.lane.b32.xlu0 %v1657, 24
        %v2008 = vpop.permute.xlu0 %2007
        %2009 = vrot.lane.b32.xlu0 %v1662, 24
        %v2010 = vpop.permute.xlu0 %2009
        %2015 = vrot.lane.b32.xlu0 %v1738, 32
        %v2016 = vpop.permute.xlu0 %2015
        %2017 = vrot.lane.b32.xlu0 %v1743, 32
        %v2018 = vpop.permute.xlu0 %2017
        %2023 = vrot.lane.b32.xlu0 %v1819, 40
        %v2024 = vpop.permute.xlu0 %2023
        %2025 = vrot.lane.b32.xlu0 %v1824, 40
        %v2026 = vpop.permute.xlu0 %2025
        %2031 = vrot.lane.b32.xlu0 %v1900, 48
        %v2032 = vpop.permute.xlu0 %2031
        %2033 = vrot.lane.b32.xlu0 %v1905, 48
        %v2034 = vpop.permute.xlu0 %2033
        %2039 = vrot.lane.b32.xlu0 %v1981, 56
        %v2040 = vpop.permute.xlu0 %2039
        %2041 = vrot.lane.b32.xlu0 %v1986, 56
        %v2042 = vpop.permute.xlu0 %2041
        %v2045 = vsel %vm455, %v1414, %v1992
        %v2046 = vsel %vm455, %v1419, %v1994
        %v2047 = vsel %vm1164, %v2045, %v2000
        %v2048 = vsel %vm1164, %v2046, %v2002
        %vm2049 = vcmask 195584
        %v2050 = vsel %vm2049, %v2047, %v2008
        %v2051 = vsel %vm2049, %v2048, %v2010
        %vm2052 = vcmask 261120
        %v2053 = vsel %vm2052, %v2050, %v2016
        %v2054 = vsel %vm2052, %v2051, %v2018
        %vm2055 = vcmask 326656
        %v2056 = vsel %vm2055, %v2053, %v2024
        %v2057 = vsel %vm2055, %v2054, %v2026
        %vm2058 = vcmask 392192
        %v2059 = vsel %vm2058, %v2056, %v2032
        %v2060 = vsel %vm2058, %v2057, %v2034
        %vm2061 = vcmask 457728
        %v2062 = vsel %vm2061, %v2059, %v2040
        %v2063 = vsel %vm2061, %v2060, %v2042
        %v2064 = vld [vmem:[#allocation7] sm:$0xff]
        %v2065 = vld [vmem:[#allocation7 + $0x8] sm:$0xff]
        %v2066 = vld [vmem:[#allocation7 + $0x10] sm:$0xff]
        %v2067 = vld [vmem:[#allocation7 + $0x18] sm:$0xff]
        %v2068 = vld [vmem:[#allocation7 + $0x20] sm:$0xff]
        %v2069 = vld [vmem:[#allocation7 + $0x28] sm:$0xff]
        %v2070 = vld [vmem:[#allocation7 + $0x30] sm:$0xff]
        %v2071 = vld [vmem:[#allocation7 + $0x38] sm:$0xff]
        %v2072 = vld [vmem:[%s3] sm:$0x1]
        %v2074 = vlaneseq
        %v2075 = vshrl.u32 %v2074, 7
        %v2076 = vsub.s32 0, %v2075
        %v2077 = vrot.slane %v2072, %v2076
        %v2080 = vsel %vm263, %v2062, 0
        %v2083 = vsel %vm263, %v2063, 0
        %2085 = vmatprep.subr.mxu0 0.0
        %2086 = vmatpush1.msra.mxu0 %v2064
        %2087 = vmatprep.subr.mxu0 0.0
        %2088 = vmatpush1.msra.mxu0 %v2065
        %2089 = vmatprep.subr.mxu0 0.0
        %2090 = vmatpush1.msra.mxu0 %v2066
        %2091 = vmatprep.subr.mxu0 0.0
        %2092 = vmatpush1.msra.mxu0 %v2067
        %2093 = vmatprep.subr.mxu0 0.0
        %2094 = vmatpush1.msra.mxu0 %v2068
        %2095 = vmatprep.subr.mxu0 0.0
        %2096 = vmatpush1.msra.mxu0 %v2069
        %2097 = vmatprep.subr.mxu0 0.0
        %2098 = vmatpush1.msra.mxu0 %v2070
        %2099 = vmatprep.subr.mxu0 0.0
        %2100 = vmatpush1.msra.mxu0 %v2071
        %2101 = vmatprep.subr.mxu0 0.0
        %2102 = vmatpush1.msra.mxu0 0.0
        %2103 = vmatprep.subr.mxu0 0.0
        %2104 = vmatpush1.msra.mxu0 0.0
        %2105 = vmatprep.subr.mxu0 0.0
        %2106 = vmatpush1.msra.mxu0 0.0
        %2107 = vmatprep.subr.mxu0 0.0
        %2108 = vmatpush1.msra.mxu0 0.0
        %2109 = vmatprep.subr.mxu0 0.0
        %2110 = vmatpush1.msra.mxu0 0.0
        %2111 = vmatprep.subr.mxu0 0.0
        %2112 = vmatpush1.msra.mxu0 0.0
        %2113 = vmatprep.subr.mxu0 0.0
        %2114 = vmatpush1.msra.mxu0 0.0
        %2115 = vmatprep.subr.mxu0 0.0
        %2116 = vmatpush1.msra.mxu0 0.0
        %2117 = vmatprep.subr.mxu0 0.0
        %2118 = vmatpush1.msra.mxu0 0.0
        %2119 = vmatprep.subr.mxu0 0.0
        %2120 = vmatpush1.msra.mxu0 0.0
        %2121 = vmatprep.subr.mxu0 0.0
        %2122 = vmatpush1.msra.mxu0 0.0
        %2123 = vmatprep.subr.mxu0 0.0
        %2124 = vmatpush1.msra.mxu0 0.0
        %2125 = vmatprep.subr.mxu0 0.0
        %2126 = vmatpush1.msra.mxu0 0.0
        %2127 = vmatprep.subr.mxu0 0.0
        %2128 = vmatpush1.msra.mxu0 0.0
        %2129 = vmatprep.subr.mxu0 0.0
        %2130 = vmatpush1.msra.mxu0 0.0
        %2131 = vmatprep.subr.mxu0 0.0
        %2132 = vmatpush1.msra.mxu0 0.0
        %2133 = vmatprep.subr.mxu0 0.0
        %2134 = vmatpush1.msra.mxu0 0.0
        %2135 = vmatprep.subr.mxu0 0.0
        %2136 = vmatpush1.msra.mxu0 0.0
        %2137 = vmatprep.subr.mxu0 0.0
        %2138 = vmatpush1.msra.mxu0 0.0
        %2139 = vmatprep.subr.mxu0 0.0
        %2140 = vmatpush1.msra.mxu0 0.0
        %2141 = vmatprep.subr.mxu0 0.0
        %2142 = vmatpush1.msra.mxu0 0.0
        %2143 = vmatprep.subr.mxu0 0.0
        %2144 = vmatpush1.msra.mxu0 0.0
        %2145 = vmatprep.subr.mxu0 0.0
        %2146 = vmatpush1.msra.mxu0 0.0
        %2147 = vmatprep.subr.mxu0 0.0
        %2148 = vmatpush1.msra.mxu0 0.0
        %2149 = vmatprep.mubr.f32.mxu0 0.0
        %2150 = vmatmul.mubr.f32.gmra.mrb[0].mxu0 %v2080
        %v2151 = vpop.f32.mrb[0].mxu0
        %v2152 = vadd.f32 %v2077, %v2151
        %v2153 = vpop.f32.mrb[0].mxu0
        %2154 = vmatprep.mubr.f32.mxu0 0.0
        %2155 = vmatmul.mubr.f32.gmra.mrb[0].mxu0 %v2083
        %v2156 = vpop.f32.mrb[0].mxu0
        %v2157 = vadd.f32 %v2077, %v2156
        %v2158 = vpop.f32.mrb[0].mxu0
        %2159 = vdwg.mxu0
        %2160 = vst.msk [vmem:[%s244] sm:$0xff] %vm263, %v2152
        %2161 = vst.msk [vmem:[%s244 + $0x8] sm:$0xff] %vm263, %v2157
        %s2162 = sand.u32 %s119, 1
        %s2163 = scalar_lea.sflag [#allocation4], %s2162
        %s2164 = sand.u32 %s119, 1
        %s2165 = smul.addr %s2164, 16
        %s2166 = scalar_lea.vmem [#allocation8], %s2165
        // Predicated region
        $region49: #{tpu_custom_call.1} parent=35 // pred_check
          %p2167 = pneg %p129
        $region50: #{tpu_custom_call.1} parent=35 // pred_check_branch
          %2169 = sbr.rel (%p2167) target = $region52
        $region51: #{tpu_custom_call.1} parent=35 // pred_region
          %s2171 = ssub.s32 256, 256
          %2172 = vsyncadd %s2163, %s2171
          %s2173 = smul.addr %s22, 2
          %s2174 = smul.addr %s2173, 128
          %s2175 = scalar_lea.hbm %s4, %s2174
          %s2176 = sshll.u32 %s2166, 4
          %s2177 = int_to_ptr.vmem [resolvable:$true] %s2176
          %2182 = dma.vmem_to_hbm [thread:$0]  %s2177, 256, %s2175, %s2163, 128, 128, 8
        $region52: #{tpu_custom_call.1} parent=35 // pred_fallthru
          _
      $region36: #{tpu_custom_call.1} parent=5 // pred_fallthru
        _
      %p2183 = scmp.le.s32.totalorder 2, %s17
      // Predicated region
      $region53: #{tpu_custom_call.1} parent=5 // pred_check
        %p2184 = pneg %p2183
      $region54: #{tpu_custom_call.1} parent=5 // pred_check_branch
        %2186 = sbr.rel (%p2184) target = $region56
      $region55: #{tpu_custom_call.1} parent=5 // pred_region
        %s2187 = ssub.s32 %s17, 2
        // Predicated region
        $region57: #{tpu_custom_call.1} parent=55 // pred_check
          %p2188 = pneg %p135
        $region58: #{tpu_custom_call.1} parent=55 // pred_check_branch
          %2190 = sbr.rel (%p2188) target = $region60
        $region59: #{tpu_custom_call.1} parent=55 // pred_region
          %s2191 = sand.u32 %s120, 1
          %s2192 = scalar_lea.sflag [#allocation4], %s2191
          %s2193 = sand.u32 %s120, 1
          %s2194 = smul.addr %s2193, 16
          %s2195 = scalar_lea.vmem [#allocation8], %s2194
          %2196 = dma.done %s2192, 256
        $region60: #{tpu_custom_call.1} parent=55 // pred_fallthru
          _
      $region56: #{tpu_custom_call.1} parent=5 // pred_fallthru
        _
    $region6: #{tpu_custom_call.1} parent=1 // loop_footer
      %s21 = sadd.s32 1, %s17
    $region7: #{tpu_custom_call.1} parent=1 // loop_footer_branch
      %16 = sbr.rel target = $region3
    $region8: #{tpu_custom_call.1} parent=1 // loop_exit
      _
    %2197 = vsyncpa [#allocation3], 1
    %s2198 = scalar_lea.sflag [#allocation3], 1
    %2199 = vsyncpa %s2198, 1
    %2200 = vsyncpa [#allocation6], 1
    %2201 = vsyncpa [#allocation4], 1
    %s2202 = scalar_lea.sflag [#allocation4], 1
    %2203 = vsyncpa %s2202, 1

</llo_original>
